<compile_context>
chip_gen: v7x
topology: tpu7x:2x2x1
jax: 0.10.0
libtpu: 0.0.40
codegen_flags: <defaults>
</compile_context>

<pallas_src>
import functools

import jax
import jax.numpy as jnp
from jax import lax
from jax.experimental import pallas as pl
from jax.experimental.pallas import tpu as pltpu

_LANE = 128
_SUB = 8
_VMEM_BLOCK_BUDGET = 24 * 1024 * 1024   # double-buffered in+out blocks stay under this
_VMEM_LIMIT_BYTES = 32 * 1024 * 1024    # safe scoped-VMEM limit on v5e/v6e/v7x
_TARGET_GRID_STEPS = 4                  # >=2 steps per TensorCore on megacore chips
_PALLAS_MIN_POINTS = 1024               # below -> fused XLA path
_PALLAS_MIN_WORK = 32768                # N * P crossover (tune per generation)


# ------------------------------ quaternion glue -------------------------------
def quat_to_rotmat(q):
    """q: (..., 4) [w, x, y, z] (unit) -> (..., 3, 3)."""
    w, x, y, z = q[..., 0], q[..., 1], q[..., 2], q[..., 3]
    r00 = 1 - 2 * (y * y + z * z); r01 = 2 * (x * y - w * z); r02 = 2 * (x * z + w * y)
    r10 = 2 * (x * y + w * z); r11 = 1 - 2 * (x * x + z * z); r12 = 2 * (y * z - w * x)
    r20 = 2 * (x * z - w * y); r21 = 2 * (y * z + w * x); r22 = 1 - 2 * (x * x + y * y)
    return jnp.stack(
        [jnp.stack([r00, r01, r02], -1),
         jnp.stack([r10, r11, r12], -1),
         jnp.stack([r20, r21, r22], -1)], axis=-2)


def quat_mul(q1, q2):
    w1, x1, y1, z1 = q1[..., 0], q1[..., 1], q1[..., 2], q1[..., 3]
    w2, x2, y2, z2 = q2[..., 0], q2[..., 1], q2[..., 2], q2[..., 3]
    return jnp.stack([
        w1 * w2 - x1 * x2 - y1 * y2 - z1 * z2,
        w1 * x2 + x1 * w2 + y1 * z2 - z1 * y2,
        w1 * y2 - x1 * z2 + y1 * w2 + z1 * x2,
        w1 * z2 + x1 * y2 - y1 * x2 + z1 * w2,
    ], axis=-1)


def se3_multiply(a, b):
    """Compose SE3 poses (..., 7): result = a ∘ b (batch shapes must broadcast,
    same requirement as the torch quaternion ops).  Negligible compute -> plain JAX."""
    qa, ta = a[..., :4], a[..., 4:]
    qb, tb = b[..., :4], b[..., 4:]
    q = quat_mul(qa, qb)
    Ra = quat_to_rotmat(qa)
    t = jnp.einsum("...ij,...j->...i", Ra, tb) + ta
    return jnp.concatenate([q, t], axis=-1)


# ----------------------------- Pallas kernel ----------------------------------
def _se3_pc_kernel(rt_ref, pts_ref, out_ref):
    """Rigid transform of one dense point tile by ALL poses.

    rt_ref  : (P, 12) f32 in SMEM, per-pose [r00 r01 r02 r10 ... r22 tx ty tz]
    pts_ref : (3, S, 128) VMEM, coordinate-major dense point tile
    out_ref : (P, 3, S, 128) VMEM, transformed tile for every pose
    """
    x = pts_ref[0]              # (S, 128)
    y = pts_ref[1]
    z = pts_ref[2]
    n_poses = out_ref.shape[0]  # static

    def one_pose(p):
        # Scalar-from-SMEM * vector FMAs; kernel is HBM-bound, VALU has huge slack.
        for r in range(3):
            out_ref[p, r] = (rt_ref[p, 3 * r + 0] * x
                             + rt_ref[p, 3 * r + 1] * y
                             + rt_ref[p, 3 * r + 2] * z
                             + rt_ref[p, 9 + r])

    if n_poses <= 8:
        # Small P: full static unroll (LLO scheduling visibility, no vreg pressure).
        for p in range(n_poses):
            one_pose(p)
    else:
        # Large P: bounded-unroll loop to avoid code-size / vreg-live-range blowup.
        def body(p, carry):
            one_pose(p)
            return carry
        lax.fori_loop(0, n_poses, body, 0, unroll=4)


def _cdiv(a, b):
    return -(-a // b)


def _round_up(a, b):
    return _cdiv(a, b) * b


def _tile_plan(n_points, n_poses):
    """Pick (s_blk, s_total): point tile = s_blk rows of 128 lanes, padded total s_total."""
    s_needed = max(1, _cdiv(n_points, _LANE))
    if s_needed <= _SUB:
        # Tiny cloud: single full-extent block (block dims == array dims is allowed).
        return s_needed, s_needed
    # Double-buffered in+out block bytes per S-row of 128 lanes:
    bytes_per_s = 2 * (n_poses + 1) * 3 * _LANE * 4
    s_cap = max(_SUB, (_VMEM_BLOCK_BUDGET // bytes_per_s) // _SUB * _SUB)
    s_blk = _round_up(_cdiv(s_needed, _TARGET_GRID_STEPS), _SUB)   # ~4 grid steps
    s_blk = min(s_blk, s_cap)
    s_total = _round_up(s_needed, s_blk)
    return s_blk, s_total


@functools.partial(jax.jit, static_argnames=("coord_major",))
def _transform_points_pallas(points, poses, *, coord_major=False):
    """points: (N, 3) f32; poses: (P, 7) [qw,qx,qy,qz,x,y,z].

    Returns (P, N, 3) (torch parity) or, with coord_major=True, (P, 3, N) which
    skips the final full-HBM transpose pass."""
    N = points.shape[0]
    P = poses.shape[0]
    s_blk, s_total = _tile_plan(N, P)
    n_pad = s_total * _LANE

    q = poses[:, :4]
    R = quat_to_rotmat(q).astype(jnp.float32)                        # (P, 3, 3)
    rt = jnp.concatenate(
        [R.reshape(P, 9), poses[:, 4:7].astype(jnp.float32)], axis=-1)  # (P, 12)

    # Coordinate-major, lane/sublane-dense points.  Pad/transpose live inside this
    # jit so XLA fuses the layout ops around the pallas_call.
    pts = (jnp.zeros((3, n_pad), jnp.float32)
           .at[:, :N].set(points.T.astype(jnp.float32))
           .reshape(3, s_total, _LANE))

    out = pl.pallas_call(
        _se3_pc_kernel,
        out_shape=jax.ShapeDtypeStruct((P, 3, s_total, _LANE), jnp.float32),
        grid_spec=pltpu.PrefetchScalarGridSpec(
            num_scalar_prefetch=0,
            grid=(s_total // s_blk,),
            in_specs=[
                pl.BlockSpec(memory_space=pltpu.MemorySpace.SMEM),      # poses (P,12)
                pl.BlockSpec((3, s_blk, _LANE), lambda n: (0, n, 0)),   # point tile
            ],
            out_specs=pl.BlockSpec((P, 3, s_blk, _LANE), lambda n: (0, 0, n, 0)),
        ),
        compiler_params=pltpu.CompilerParams(
            dimension_semantics=("parallel",),
            vmem_limit_bytes=_VMEM_LIMIT_BYTES,
        ),
        cost_estimate=pl.CostEstimate(
            flops=18 * P * n_pad,
            transcendentals=0,
            bytes_accessed=(P + 1) * 3 * n_pad * 4,
        ),
    )(rt, pts)

    out = out.reshape(P, 3, n_pad)[:, :, :N]   # free reshape + pad slice
    if coord_major:
        return out                             # (P, 3, N): no extra HBM pass
    # Torch-parity layout.  This is a full extra HBM pass over the (P,N,3) result;
    # consumers that accept coordinate-major points should use coord_major=True.
    return jnp.transpose(out, (0, 2, 1))       # (P, N, 3)


@jax.jit
def _transform_points_ref(points, poses):
    """Fused-XLA fallback for small inputs (and pure-JAX reference)."""
    q, t = poses[:, :4], poses[:, 4:]
    R = quat_to_rotmat(q)
    return jnp.einsum("pij,nj->pni", R, points) + t[:, None, :]


def transform_points(points, poses, coord_major: bool = False):
    """Dispatch: Pallas kernel for real clouds, fused XLA path for small ones."""
    N, P = points.shape[0], poses.shape[0]
    if N < _PALLAS_MIN_POINTS or N * P < _PALLAS_MIN_WORK:
        out = _transform_points_ref(points, poses)                   # (P, N, 3)
        return jnp.transpose(out, (0, 2, 1)) if coord_major else out
    return _transform_points_pallas(points, poses, coord_major=coord_major)


# ----------------------------- ApplySE3 "module" ------------------------------
class ApplySE3:
    """JAX/Pallas equivalent of edf.preprocess.ApplySE3.

    Supported data:
      None
      PointCloud     : dict {"points": (N,3), "colors": (N,3)}
      SE3            : jnp array (M, 7)  [qw,qx,qy,qz,x,y,z]
      TargetPoseDemo : dict {"scene_pc": PC, "grasp_pc": PC, "target_poses": SE3}
      DemoSequence   : list of the above
    """

    def __init__(self, poses, apply_right: bool = False):
        poses = jnp.asarray(poses, dtype=jnp.float32)              # (P, 7), detached copy
        q = poses[:, :4]
        q = q / jnp.linalg.norm(q, axis=-1, keepdims=True)         # ensure unit quats
        self.poses = jnp.concatenate([q, poses[:, 4:]], axis=-1)
        self.apply_right = apply_right

    def __call__(self, data):
        return self._apply(data)

    def _apply(self, data):
        if data is None:
            return None
        if isinstance(data, list):                                    # DemoSequence
            return [self._apply(d) for d in data]
        if isinstance(data, dict) and "target_poses" in data:         # TargetPoseDemo
            return {
                "scene_pc": self._apply(data["scene_pc"]),
                "grasp_pc": self._apply(data["grasp_pc"]),
                "target_poses": self._apply(data["target_poses"]),
            }
        if isinstance(data, dict) and "points" in data:               # PointCloud
            if data["points"].shape[0] == 0:                          # is_empty()
                return data
            # TODO(synk): consumers that accept coordinate-major (P,3,N) points should
            # use coord_major=True here to skip the final HBM transpose pass.
            new_pts = transform_points(data["points"], self.poses)    # (P, N, 3)
            return {"points": new_pts, "colors": data["colors"]}
        if isinstance(data, jnp.ndarray) and data.shape[-1] == 7:     # SE3
            if self.apply_right:
                return se3_multiply(data, self.poses)
            return se3_multiply(self.poses, data)
        raise TypeError(f"Unknown data type ({type(data)}) is given.")


# ---------------------------------- main --------------------------------------
if __name__ == "__main__":
    key = jax.random.PRNGKey(0)
    k1, k2, k3, k4, k5, k6, k7 = jax.random.split(key, 7)

    P = 8           # poses applied by the module
    N_SCENE = 4096  # scene cloud -> Pallas kernel, 4 parallel grid steps of (3,8,128)
    N_GRASP = 100   # grasp cloud -> fused XLA fallback
    M = P           # target poses (batch-compatible with the module poses)

    # Module "parameters": the SE3 poses given at __init__.
    q = jax.random.normal(k1, (P, 4), dtype=jnp.float32)
    q = q / jnp.linalg.norm(q, axis=-1, keepdims=True)
    trans = jax.random.normal(k2, (P, 3), dtype=jnp.float32)
    poses = jnp.concatenate([q, trans], axis=-1)                      # (P, 7)

    module = ApplySE3(poses, apply_right=False)

    scene_points = jax.random.normal(k3, (N_SCENE, 3), dtype=jnp.float32)
    scene_colors = jax.random.uniform(k4, (N_SCENE, 3), dtype=jnp.float32)
    grasp_points = jax.random.normal(k5, (N_GRASP, 3), dtype=jnp.float32)
    grasp_colors = jax.random.uniform(k6, (N_GRASP, 3), dtype=jnp.float32)

    tq = jax.random.normal(k7, (M, 4), dtype=jnp.float32)
    tq = tq / jnp.linalg.norm(tq, axis=-1, keepdims=True)
    target_poses = jnp.concatenate([tq, jnp.ones((M, 3), jnp.float32)], axis=-1)  # (M, 7)

    demo = {
        "scene_pc": {"points": scene_points, "colors": scene_colors},
        "grasp_pc": {"points": grasp_points, "colors": grasp_colors},
        "target_poses": target_poses,
    }

    out = module(demo)
    out = jax.block_until_ready(out)

    # Pure-JAX exact-f32 reference.
    R = quat_to_rotmat(q)
    ref_scene = jnp.einsum("pij,nj->pni", R, scene_points) + trans[:, None, :]
    ref_grasp = jnp.einsum("pij,nj->pni", R, grasp_points) + trans[:, None, :]

    # Module path (Pallas for scene, XLA fallback for grasp).
    assert out["scene_pc"]["points"].shape == (P, N_SCENE, 3)
    assert out["grasp_pc"]["points"].shape == (P, N_GRASP, 3)
    assert jnp.allclose(out["scene_pc"]["points"], ref_scene, atol=1e-5), "scene mismatch"
    assert jnp.allclose(out["grasp_pc"]["points"], ref_grasp, atol=1e-5), "grasp mismatch"

    # Explicitly exercise the Pallas kernel in both output layouts.
    pallas_scene = jax.block_until_ready(
        _transform_points_pallas(scene_points, module.poses))
    assert pallas_scene.shape == (P, N_SCENE, 3)
    assert jnp.allclose(pallas_scene, ref_scene, atol=1e-5), "pallas scene mismatch"

    pallas_scene_cm = jax.block_until_ready(
        _transform_points_pallas(scene_points, module.poses, coord_major=True))
    assert pallas_scene_cm.shape == (P, 3, N_SCENE)
    assert jnp.allclose(jnp.transpose(pallas_scene_cm, (0, 2, 1)), ref_scene,
                        atol=1e-5), "pallas coord-major mismatch"

    assert out["target_poses"].shape == (M, 7)
    assert bool(jnp.all(jnp.isfinite(out["target_poses"])))

    print("KERNEL_OK")
</pallas_src>

<mosaic_0001>
module attributes {stable_mosaic.version = 11 : i64} {
  func.func @_se3_pc_kernel(%arg0: i32, %arg1: memref<8x12xf32, #tpu.memory_space<smem>>, %arg2: memref<3x8x128xf32, #tpu.memory_space<vmem>>, %arg3: memref<8x3x8x128xf32, #tpu.memory_space<vmem>>) attributes {dimension_semantics = [#tpu.dimension_semantics<parallel>], iteration_bounds = array<i64: 4>, scalar_prefetch = 0 : i64, scratch_operands = 0 : i64, tpu.core_type = #tpu.core_type<tc>, window_params = [{transform_indices = @transform_0, window_bounds = array<i64: 8, 12>}, {transform_indices = @transform_1, window_bounds = array<i64: 3, 8, 128>}, {transform_indices = @transform_2, window_bounds = array<i64: 8, 3, 8, 128>}]} {
    %c0 = arith.constant 0 : index
    %c0_0 = arith.constant 0 : index
    %c0_1 = arith.constant 0 : index
    %0 = vector.load %arg2[%c0, %c0_0, %c0_1] : memref<3x8x128xf32, #tpu.memory_space<vmem>>, vector<1x8x128xf32>
    %1 = vector.shape_cast %0 : vector<1x8x128xf32> to vector<8x128xf32>
    %c1 = arith.constant 1 : index
    %c0_2 = arith.constant 0 : index
    %c0_3 = arith.constant 0 : index
    %2 = vector.load %arg2[%c1, %c0_2, %c0_3] : memref<3x8x128xf32, #tpu.memory_space<vmem>>, vector<1x8x128xf32>
    %3 = vector.shape_cast %2 : vector<1x8x128xf32> to vector<8x128xf32>
    %c2 = arith.constant 2 : index
    %c0_4 = arith.constant 0 : index
    %c0_5 = arith.constant 0 : index
    %4 = vector.load %arg2[%c2, %c0_4, %c0_5] : memref<3x8x128xf32, #tpu.memory_space<vmem>>, vector<1x8x128xf32>
    %5 = vector.shape_cast %4 : vector<1x8x128xf32> to vector<8x128xf32>
    %c0_6 = arith.constant 0 : index
    %c0_7 = arith.constant 0 : index
    %6 = memref.load %arg1[%c0_6, %c0_7] : memref<8x12xf32, #tpu.memory_space<smem>>
    %7 = vector.broadcast %6 : f32 to vector<8x128xf32>
    %8 = arith.mulf %7, %1 : vector<8x128xf32>
    %c0_8 = arith.constant 0 : index
    %c1_9 = arith.constant 1 : index
    %9 = memref.load %arg1[%c0_8, %c1_9] : memref<8x12xf32, #tpu.memory_space<smem>>
    %10 = vector.broadcast %9 : f32 to vector<8x128xf32>
    %11 = arith.mulf %10, %3 : vector<8x128xf32>
    %12 = arith.addf %8, %11 : vector<8x128xf32>
    %c0_10 = arith.constant 0 : index
    %c2_11 = arith.constant 2 : index
    %13 = memref.load %arg1[%c0_10, %c2_11] : memref<8x12xf32, #tpu.memory_space<smem>>
    %14 = vector.broadcast %13 : f32 to vector<8x128xf32>
    %15 = arith.mulf %14, %5 : vector<8x128xf32>
    %16 = arith.addf %12, %15 : vector<8x128xf32>
    %c0_12 = arith.constant 0 : index
    %c9 = arith.constant 9 : index
    %17 = memref.load %arg1[%c0_12, %c9] : memref<8x12xf32, #tpu.memory_space<smem>>
    %18 = vector.broadcast %17 : f32 to vector<8x128xf32>
    %19 = arith.addf %16, %18 : vector<8x128xf32>
    %c0_13 = arith.constant 0 : index
    %c0_14 = arith.constant 0 : index
    %c0_15 = arith.constant 0 : index
    %c0_16 = arith.constant 0 : index
    %20 = vector.load %arg3[%c0_13, %c0_14, %c0_15, %c0_16] : memref<8x3x8x128xf32, #tpu.memory_space<vmem>>, vector<1x1x8x128xf32>
    %21 = vector.shape_cast %20 : vector<1x1x8x128xf32> to vector<8x128xf32>
    %22 = vector.shape_cast %19 : vector<8x128xf32> to vector<1x1x8x128xf32>
    tpu.vector_store %arg3[%c0_13, %c0_14, %c0_15, %c0_16], %22 {strides = array<i32>} : memref<8x3x8x128xf32, #tpu.memory_space<vmem>>, vector<1x1x8x128xf32>,
    %c0_17 = arith.constant 0 : index
    %c3 = arith.constant 3 : index
    %23 = memref.load %arg1[%c0_17, %c3] : memref<8x12xf32, #tpu.memory_space<smem>>
    %24 = vector.broadcast %23 : f32 to vector<8x128xf32>
    %25 = arith.mulf %24, %1 : vector<8x128xf32>
    %c0_18 = arith.constant 0 : index
    %c4 = arith.constant 4 : index
    %26 = memref.load %arg1[%c0_18, %c4] : memref<8x12xf32, #tpu.memory_space<smem>>
    %27 = vector.broadcast %26 : f32 to vector<8x128xf32>
    %28 = arith.mulf %27, %3 : vector<8x128xf32>
    %29 = arith.addf %25, %28 : vector<8x128xf32>
    %c0_19 = arith.constant 0 : index
    %c5 = arith.constant 5 : index
    %30 = memref.load %arg1[%c0_19, %c5] : memref<8x12xf32, #tpu.memory_space<smem>>
    %31 = vector.broadcast %30 : f32 to vector<8x128xf32>
    %32 = arith.mulf %31, %5 : vector<8x128xf32>
    %33 = arith.addf %29, %32 : vector<8x128xf32>
    %c0_20 = arith.constant 0 : index
    %c10 = arith.constant 10 : index
    %34 = memref.load %arg1[%c0_20, %c10] : memref<8x12xf32, #tpu.memory_space<smem>>
    %35 = vector.broadcast %34 : f32 to vector<8x128xf32>
    %36 = arith.addf %33, %35 : vector<8x128xf32>
    %c0_21 = arith.constant 0 : index
    %c1_22 = arith.constant 1 : index
    %c0_23 = arith.constant 0 : index
    %c0_24 = arith.constant 0 : index
    %37 = vector.load %arg3[%c0_21, %c1_22, %c0_23, %c0_24] : memref<8x3x8x128xf32, #tpu.memory_space<vmem>>, vector<1x1x8x128xf32>
    %38 = vector.shape_cast %37 : vector<1x1x8x128xf32> to vector<8x128xf32>
    %39 = vector.shape_cast %36 : vector<8x128xf32> to vector<1x1x8x128xf32>
    tpu.vector_store %arg3[%c0_21, %c1_22, %c0_23, %c0_24], %39 {strides = array<i32>} : memref<8x3x8x128xf32, #tpu.memory_space<vmem>>, vector<1x1x8x128xf32>,
    %c0_25 = arith.constant 0 : index
    %c6 = arith.constant 6 : index
    %40 = memref.load %arg1[%c0_25, %c6] : memref<8x12xf32, #tpu.memory_space<smem>>
    %41 = vector.broadcast %40 : f32 to vector<8x128xf32>
    %42 = arith.mulf %41, %1 : vector<8x128xf32>
    %c0_26 = arith.constant 0 : index
    %c7 = arith.constant 7 : index
    %43 = memref.load %arg1[%c0_26, %c7] : memref<8x12xf32, #tpu.memory_space<smem>>
    %44 = vector.broadcast %43 : f32 to vector<8x128xf32>
    %45 = arith.mulf %44, %3 : vector<8x128xf32>
    %46 = arith.addf %42, %45 : vector<8x128xf32>
    %c0_27 = arith.constant 0 : index
    %c8 = arith.constant 8 : index
    %47 = memref.load %arg1[%c0_27, %c8] : memref<8x12xf32, #tpu.memory_space<smem>>
    %48 = vector.broadcast %47 : f32 to vector<8x128xf32>
    %49 = arith.mulf %48, %5 : vector<8x128xf32>
    %50 = arith.addf %46, %49 : vector<8x128xf32>
    %c0_28 = arith.constant 0 : index
    %c11 = arith.constant 11 : index
    %51 = memref.load %arg1[%c0_28, %c11] : memref<8x12xf32, #tpu.memory_space<smem>>
    %52 = vector.broadcast %51 : f32 to vector<8x128xf32>
    %53 = arith.addf %50, %52 : vector<8x128xf32>
    %c0_29 = arith.constant 0 : index
    %c2_30 = arith.constant 2 : index
    %c0_31 = arith.constant 0 : index
    %c0_32 = arith.constant 0 : index
    %54 = vector.load %arg3[%c0_29, %c2_30, %c0_31, %c0_32] : memref<8x3x8x128xf32, #tpu.memory_space<vmem>>, vector<1x1x8x128xf32>
    %55 = vector.shape_cast %54 : vector<1x1x8x128xf32> to vector<8x128xf32>
    %56 = vector.shape_cast %53 : vector<8x128xf32> to vector<1x1x8x128xf32>
    tpu.vector_store %arg3[%c0_29, %c2_30, %c0_31, %c0_32], %56 {strides = array<i32>} : memref<8x3x8x128xf32, #tpu.memory_space<vmem>>, vector<1x1x8x128xf32>,
    %c1_33 = arith.constant 1 : index
    %c0_34 = arith.constant 0 : index
    %57 = memref.load %arg1[%c1_33, %c0_34] : memref<8x12xf32, #tpu.memory_space<smem>>
    %58 = vector.broadcast %57 : f32 to vector<8x128xf32>
    %59 = arith.mulf %58, %1 : vector<8x128xf32>
    %c1_35 = arith.constant 1 : index
    %c1_36 = arith.constant 1 : index
    %60 = memref.load %arg1[%c1_35, %c1_36] : memref<8x12xf32, #tpu.memory_space<smem>>
    %61 = vector.broadcast %60 : f32 to vector<8x128xf32>
    %62 = arith.mulf %61, %3 : vector<8x128xf32>
    %63 = arith.addf %59, %62 : vector<8x128xf32>
    %c1_37 = arith.constant 1 : index
    %c2_38 = arith.constant 2 : index
    %64 = memref.load %arg1[%c1_37, %c2_38] : memref<8x12xf32, #tpu.memory_space<smem>>
    %65 = vector.broadcast %64 : f32 to vector<8x128xf32>
    %66 = arith.mulf %65, %5 : vector<8x128xf32>
    %67 = arith.addf %63, %66 : vector<8x128xf32>
    %c1_39 = arith.constant 1 : index
    %c9_40 = arith.constant 9 : index
    %68 = memref.load %arg1[%c1_39, %c9_40] : memref<8x12xf32, #tpu.memory_space<smem>>
    %69 = vector.broadcast %68 : f32 to vector<8x128xf32>
    %70 = arith.addf %67, %69 : vector<8x128xf32>
    %c1_41 = arith.constant 1 : index
    %c0_42 = arith.constant 0 : index
    %c0_43 = arith.constant 0 : index
    %c0_44 = arith.constant 0 : index
    %71 = vector.load %arg3[%c1_41, %c0_42, %c0_43, %c0_44] : memref<8x3x8x128xf32, #tpu.memory_space<vmem>>, vector<1x1x8x128xf32>
    %72 = vector.shape_cast %71 : vector<1x1x8x128xf32> to vector<8x128xf32>
    %73 = vector.shape_cast %70 : vector<8x128xf32> to vector<1x1x8x128xf32>
    tpu.vector_store %arg3[%c1_41, %c0_42, %c0_43, %c0_44], %73 {strides = array<i32>} : memref<8x3x8x128xf32, #tpu.memory_space<vmem>>, vector<1x1x8x128xf32>,
    %c1_45 = arith.constant 1 : index
    %c3_46 = arith.constant 3 : index
    %74 = memref.load %arg1[%c1_45, %c3_46] : memref<8x12xf32, #tpu.memory_space<smem>>
    %75 = vector.broadcast %74 : f32 to vector<8x128xf32>
    %76 = arith.mulf %75, %1 : vector<8x128xf32>
    %c1_47 = arith.constant 1 : index
    %c4_48 = arith.constant 4 : index
    %77 = memref.load %arg1[%c1_47, %c4_48] : memref<8x12xf32, #tpu.memory_space<smem>>
    %78 = vector.broadcast %77 : f32 to vector<8x128xf32>
    %79 = arith.mulf %78, %3 : vector<8x128xf32>
    %80 = arith.addf %76, %79 : vector<8x128xf32>
    %c1_49 = arith.constant 1 : index
    %c5_50 = arith.constant 5 : index
    %81 = memref.load %arg1[%c1_49, %c5_50] : memref<8x12xf32, #tpu.memory_space<smem>>
    %82 = vector.broadcast %81 : f32 to vector<8x128xf32>
    %83 = arith.mulf %82, %5 : vector<8x128xf32>
    %84 = arith.addf %80, %83 : vector<8x128xf32>
    %c1_51 = arith.constant 1 : index
    %c10_52 = arith.constant 10 : index
    %85 = memref.load %arg1[%c1_51, %c10_52] : memref<8x12xf32, #tpu.memory_space<smem>>
    %86 = vector.broadcast %85 : f32 to vector<8x128xf32>
    %87 = arith.addf %84, %86 : vector<8x128xf32>
    %c1_53 = arith.constant 1 : index
    %c1_54 = arith.constant 1 : index
    %c0_55 = arith.constant 0 : index
    %c0_56 = arith.constant 0 : index
    %88 = vector.load %arg3[%c1_53, %c1_54, %c0_55, %c0_56] : memref<8x3x8x128xf32, #tpu.memory_space<vmem>>, vector<1x1x8x128xf32>
    %89 = vector.shape_cast %88 : vector<1x1x8x128xf32> to vector<8x128xf32>
    %90 = vector.shape_cast %87 : vector<8x128xf32> to vector<1x1x8x128xf32>
    tpu.vector_store %arg3[%c1_53, %c1_54, %c0_55, %c0_56], %90 {strides = array<i32>} : memref<8x3x8x128xf32, #tpu.memory_space<vmem>>, vector<1x1x8x128xf32>,
    %c1_57 = arith.constant 1 : index
    %c6_58 = arith.constant 6 : index
    %91 = memref.load %arg1[%c1_57, %c6_58] : memref<8x12xf32, #tpu.memory_space<smem>>
    %92 = vector.broadcast %91 : f32 to vector<8x128xf32>
    %93 = arith.mulf %92, %1 : vector<8x128xf32>
    %c1_59 = arith.constant 1 : index
    %c7_60 = arith.constant 7 : index
    %94 = memref.load %arg1[%c1_59, %c7_60] : memref<8x12xf32, #tpu.memory_space<smem>>
    %95 = vector.broadcast %94 : f32 to vector<8x128xf32>
    %96 = arith.mulf %95, %3 : vector<8x128xf32>
    %97 = arith.addf %93, %96 : vector<8x128xf32>
    %c1_61 = arith.constant 1 : index
    %c8_62 = arith.constant 8 : index
    %98 = memref.load %arg1[%c1_61, %c8_62] : memref<8x12xf32, #tpu.memory_space<smem>>
    %99 = vector.broadcast %98 : f32 to vector<8x128xf32>
    %100 = arith.mulf %99, %5 : vector<8x128xf32>
    %101 = arith.addf %97, %100 : vector<8x128xf32>
    %c1_63 = arith.constant 1 : index
    %c11_64 = arith.constant 11 : index
    %102 = memref.load %arg1[%c1_63, %c11_64] : memref<8x12xf32, #tpu.memory_space<smem>>
    %103 = vector.broadcast %102 : f32 to vector<8x128xf32>
    %104 = arith.addf %101, %103 : vector<8x128xf32>
    %c1_65 = arith.constant 1 : index
    %c2_66 = arith.constant 2 : index
    %c0_67 = arith.constant 0 : index
    %c0_68 = arith.constant 0 : index
    %105 = vector.load %arg3[%c1_65, %c2_66, %c0_67, %c0_68] : memref<8x3x8x128xf32, #tpu.memory_space<vmem>>, vector<1x1x8x128xf32>
    %106 = vector.shape_cast %105 : vector<1x1x8x128xf32> to vector<8x128xf32>
    %107 = vector.shape_cast %104 : vector<8x128xf32> to vector<1x1x8x128xf32>
    tpu.vector_store %arg3[%c1_65, %c2_66, %c0_67, %c0_68], %107 {strides = array<i32>} : memref<8x3x8x128xf32, #tpu.memory_space<vmem>>, vector<1x1x8x128xf32>,
    %c2_69 = arith.constant 2 : index
    %c0_70 = arith.constant 0 : index
    %108 = memref.load %arg1[%c2_69, %c0_70] : memref<8x12xf32, #tpu.memory_space<smem>>
    %109 = vector.broadcast %108 : f32 to vector<8x128xf32>
    %110 = arith.mulf %109, %1 : vector<8x128xf32>
    %c2_71 = arith.constant 2 : index
    %c1_72 = arith.constant 1 : index
    %111 = memref.load %arg1[%c2_71, %c1_72] : memref<8x12xf32, #tpu.memory_space<smem>>
    %112 = vector.broadcast %111 : f32 to vector<8x128xf32>
    %113 = arith.mulf %112, %3 : vector<8x128xf32>
    %114 = arith.addf %110, %113 : vector<8x128xf32>
    %c2_73 = arith.constant 2 : index
    %c2_74 = arith.constant 2 : index
    %115 = memref.load %arg1[%c2_73, %c2_74] : memref<8x12xf32, #tpu.memory_space<smem>>
    %116 = vector.broadcast %115 : f32 to vector<8x128xf32>
    %117 = arith.mulf %116, %5 : vector<8x128xf32>
    %118 = arith.addf %114, %117 : vector<8x128xf32>
    %c2_75 = arith.constant 2 : index
    %c9_76 = arith.constant 9 : index
    %119 = memref.load %arg1[%c2_75, %c9_76] : memref<8x12xf32, #tpu.memory_space<smem>>
    %120 = vector.broadcast %119 : f32 to vector<8x128xf32>
    %121 = arith.addf %118, %120 : vector<8x128xf32>
    %c2_77 = arith.constant 2 : index
    %c0_78 = arith.constant 0 : index
    %c0_79 = arith.constant 0 : index
    %c0_80 = arith.constant 0 : index
    %122 = vector.load %arg3[%c2_77, %c0_78, %c0_79, %c0_80] : memref<8x3x8x128xf32, #tpu.memory_space<vmem>>, vector<1x1x8x128xf32>
    %123 = vector.shape_cast %122 : vector<1x1x8x128xf32> to vector<8x128xf32>
    %124 = vector.shape_cast %121 : vector<8x128xf32> to vector<1x1x8x128xf32>
    tpu.vector_store %arg3[%c2_77, %c0_78, %c0_79, %c0_80], %124 {strides = array<i32>} : memref<8x3x8x128xf32, #tpu.memory_space<vmem>>, vector<1x1x8x128xf32>,
    %c2_81 = arith.constant 2 : index
    %c3_82 = arith.constant 3 : index
    %125 = memref.load %arg1[%c2_81, %c3_82] : memref<8x12xf32, #tpu.memory_space<smem>>
    %126 = vector.broadcast %125 : f32 to vector<8x128xf32>
    %127 = arith.mulf %126, %1 : vector<8x128xf32>
    %c2_83 = arith.constant 2 : index
    %c4_84 = arith.constant 4 : index
    %128 = memref.load %arg1[%c2_83, %c4_84] : memref<8x12xf32, #tpu.memory_space<smem>>
    %129 = vector.broadcast %128 : f32 to vector<8x128xf32>
    %130 = arith.mulf %129, %3 : vector<8x128xf32>
    %131 = arith.addf %127, %130 : vector<8x128xf32>
    %c2_85 = arith.constant 2 : index
    %c5_86 = arith.constant 5 : index
    %132 = memref.load %arg1[%c2_85, %c5_86] : memref<8x12xf32, #tpu.memory_space<smem>>
    %133 = vector.broadcast %132 : f32 to vector<8x128xf32>
    %134 = arith.mulf %133, %5 : vector<8x128xf32>
    %135 = arith.addf %131, %134 : vector<8x128xf32>
    %c2_87 = arith.constant 2 : index
    %c10_88 = arith.constant 10 : index
    %136 = memref.load %arg1[%c2_87, %c10_88] : memref<8x12xf32, #tpu.memory_space<smem>>
    %137 = vector.broadcast %136 : f32 to vector<8x128xf32>
    %138 = arith.addf %135, %137 : vector<8x128xf32>
    %c2_89 = arith.constant 2 : index
    %c1_90 = arith.constant 1 : index
    %c0_91 = arith.constant 0 : index
    %c0_92 = arith.constant 0 : index
    %139 = vector.load %arg3[%c2_89, %c1_90, %c0_91, %c0_92] : memref<8x3x8x128xf32, #tpu.memory_space<vmem>>, vector<1x1x8x128xf32>
    %140 = vector.shape_cast %139 : vector<1x1x8x128xf32> to vector<8x128xf32>
    %141 = vector.shape_cast %138 : vector<8x128xf32> to vector<1x1x8x128xf32>
    tpu.vector_store %arg3[%c2_89, %c1_90, %c0_91, %c0_92], %141 {strides = array<i32>} : memref<8x3x8x128xf32, #tpu.memory_space<vmem>>, vector<1x1x8x128xf32>,
    %c2_93 = arith.constant 2 : index
    %c6_94 = arith.constant 6 : index
    %142 = memref.load %arg1[%c2_93, %c6_94] : memref<8x12xf32, #tpu.memory_space<smem>>
    %143 = vector.broadcast %142 : f32 to vector<8x128xf32>
    %144 = arith.mulf %143, %1 : vector<8x128xf32>
    %c2_95 = arith.constant 2 : index
    %c7_96 = arith.constant 7 : index
    %145 = memref.load %arg1[%c2_95, %c7_96] : memref<8x12xf32, #tpu.memory_space<smem>>
    %146 = vector.broadcast %145 : f32 to vector<8x128xf32>
    %147 = arith.mulf %146, %3 : vector<8x128xf32>
    %148 = arith.addf %144, %147 : vector<8x128xf32>
    %c2_97 = arith.constant 2 : index
    %c8_98 = arith.constant 8 : index
    %149 = memref.load %arg1[%c2_97, %c8_98] : memref<8x12xf32, #tpu.memory_space<smem>>
    %150 = vector.broadcast %149 : f32 to vector<8x128xf32>
    %151 = arith.mulf %150, %5 : vector<8x128xf32>
    %152 = arith.addf %148, %151 : vector<8x128xf32>
    %c2_99 = arith.constant 2 : index
    %c11_100 = arith.constant 11 : index
    %153 = memref.load %arg1[%c2_99, %c11_100] : memref<8x12xf32, #tpu.memory_space<smem>>
    %154 = vector.broadcast %153 : f32 to vector<8x128xf32>
    %155 = arith.addf %152, %154 : vector<8x128xf32>
    %c2_101 = arith.constant 2 : index
    %c2_102 = arith.constant 2 : index
    %c0_103 = arith.constant 0 : index
    %c0_104 = arith.constant 0 : index
    %156 = vector.load %arg3[%c2_101, %c2_102, %c0_103, %c0_104] : memref<8x3x8x128xf32, #tpu.memory_space<vmem>>, vector<1x1x8x128xf32>
    %157 = vector.shape_cast %156 : vector<1x1x8x128xf32> to vector<8x128xf32>
    %158 = vector.shape_cast %155 : vector<8x128xf32> to vector<1x1x8x128xf32>
    tpu.vector_store %arg3[%c2_101, %c2_102, %c0_103, %c0_104], %158 {strides = array<i32>} : memref<8x3x8x128xf32, #tpu.memory_space<vmem>>, vector<1x1x8x128xf32>,
    %c3_105 = arith.constant 3 : index
    %c0_106 = arith.constant 0 : index
    %159 = memref.load %arg1[%c3_105, %c0_106] : memref<8x12xf32, #tpu.memory_space<smem>>
    %160 = vector.broadcast %159 : f32 to vector<8x128xf32>
    %161 = arith.mulf %160, %1 : vector<8x128xf32>
    %c3_107 = arith.constant 3 : index
    %c1_108 = arith.constant 1 : index
    %162 = memref.load %arg1[%c3_107, %c1_108] : memref<8x12xf32, #tpu.memory_space<smem>>
    %163 = vector.broadcast %162 : f32 to vector<8x128xf32>
    %164 = arith.mulf %163, %3 : vector<8x128xf32>
    %165 = arith.addf %161, %164 : vector<8x128xf32>
    %c3_109 = arith.constant 3 : index
    %c2_110 = arith.constant 2 : index
    %166 = memref.load %arg1[%c3_109, %c2_110] : memref<8x12xf32, #tpu.memory_space<smem>>
    %167 = vector.broadcast %166 : f32 to vector<8x128xf32>
    %168 = arith.mulf %167, %5 : vector<8x128xf32>
    %169 = arith.addf %165, %168 : vector<8x128xf32>
    %c3_111 = arith.constant 3 : index
    %c9_112 = arith.constant 9 : index
    %170 = memref.load %arg1[%c3_111, %c9_112] : memref<8x12xf32, #tpu.memory_space<smem>>
    %171 = vector.broadcast %170 : f32 to vector<8x128xf32>
    %172 = arith.addf %169, %171 : vector<8x128xf32>
    %c3_113 = arith.constant 3 : index
    %c0_114 = arith.constant 0 : index
    %c0_115 = arith.constant 0 : index
    %c0_116 = arith.constant 0 : index
    %173 = vector.load %arg3[%c3_113, %c0_114, %c0_115, %c0_116] : memref<8x3x8x128xf32, #tpu.memory_space<vmem>>, vector<1x1x8x128xf32>
    %174 = vector.shape_cast %173 : vector<1x1x8x128xf32> to vector<8x128xf32>
    %175 = vector.shape_cast %172 : vector<8x128xf32> to vector<1x1x8x128xf32>
    tpu.vector_store %arg3[%c3_113, %c0_114, %c0_115, %c0_116], %175 {strides = array<i32>} : memref<8x3x8x128xf32, #tpu.memory_space<vmem>>, vector<1x1x8x128xf32>,
    %c3_117 = arith.constant 3 : index
    %c3_118 = arith.constant 3 : index
    %176 = memref.load %arg1[%c3_117, %c3_118] : memref<8x12xf32, #tpu.memory_space<smem>>
    %177 = vector.broadcast %176 : f32 to vector<8x128xf32>
    %178 = arith.mulf %177, %1 : vector<8x128xf32>
    %c3_119 = arith.constant 3 : index
    %c4_120 = arith.constant 4 : index
    %179 = memref.load %arg1[%c3_119, %c4_120] : memref<8x12xf32, #tpu.memory_space<smem>>
    %180 = vector.broadcast %179 : f32 to vector<8x128xf32>
    %181 = arith.mulf %180, %3 : vector<8x128xf32>
    %182 = arith.addf %178, %181 : vector<8x128xf32>
    %c3_121 = arith.constant 3 : index
    %c5_122 = arith.constant 5 : index
    %183 = memref.load %arg1[%c3_121, %c5_122] : memref<8x12xf32, #tpu.memory_space<smem>>
    %184 = vector.broadcast %183 : f32 to vector<8x128xf32>
    %185 = arith.mulf %184, %5 : vector<8x128xf32>
    %186 = arith.addf %182, %185 : vector<8x128xf32>
    %c3_123 = arith.constant 3 : index
    %c10_124 = arith.constant 10 : index
    %187 = memref.load %arg1[%c3_123, %c10_124] : memref<8x12xf32, #tpu.memory_space<smem>>
    %188 = vector.broadcast %187 : f32 to vector<8x128xf32>
    %189 = arith.addf %186, %188 : vector<8x128xf32>
    %c3_125 = arith.constant 3 : index
    %c1_126 = arith.constant 1 : index
    %c0_127 = arith.constant 0 : index
    %c0_128 = arith.constant 0 : index
    %190 = vector.load %arg3[%c3_125, %c1_126, %c0_127, %c0_128] : memref<8x3x8x128xf32, #tpu.memory_space<vmem>>, vector<1x1x8x128xf32>
    %191 = vector.shape_cast %190 : vector<1x1x8x128xf32> to vector<8x128xf32>
    %192 = vector.shape_cast %189 : vector<8x128xf32> to vector<1x1x8x128xf32>
    tpu.vector_store %arg3[%c3_125, %c1_126, %c0_127, %c0_128], %192 {strides = array<i32>} : memref<8x3x8x128xf32, #tpu.memory_space<vmem>>, vector<1x1x8x128xf32>,
    %c3_129 = arith.constant 3 : index
    %c6_130 = arith.constant 6 : index
    %193 = memref.load %arg1[%c3_129, %c6_130] : memref<8x12xf32, #tpu.memory_space<smem>>
    %194 = vector.broadcast %193 : f32 to vector<8x128xf32>
    %195 = arith.mulf %194, %1 : vector<8x128xf32>
    %c3_131 = arith.constant 3 : index
    %c7_132 = arith.constant 7 : index
    %196 = memref.load %arg1[%c3_131, %c7_132] : memref<8x12xf32, #tpu.memory_space<smem>>
    %197 = vector.broadcast %196 : f32 to vector<8x128xf32>
    %198 = arith.mulf %197, %3 : vector<8x128xf32>
    %199 = arith.addf %195, %198 : vector<8x128xf32>
    %c3_133 = arith.constant 3 : index
    %c8_134 = arith.constant 8 : index
    %200 = memref.load %arg1[%c3_133, %c8_134] : memref<8x12xf32, #tpu.memory_space<smem>>
    %201 = vector.broadcast %200 : f32 to vector<8x128xf32>
    %202 = arith.mulf %201, %5 : vector<8x128xf32>
    %203 = arith.addf %199, %202 : vector<8x128xf32>
    %c3_135 = arith.constant 3 : index
    %c11_136 = arith.constant 11 : index
    %204 = memref.load %arg1[%c3_135, %c11_136] : memref<8x12xf32, #tpu.memory_space<smem>>
    %205 = vector.broadcast %204 : f32 to vector<8x128xf32>
    %206 = arith.addf %203, %205 : vector<8x128xf32>
    %c3_137 = arith.constant 3 : index
    %c2_138 = arith.constant 2 : index
    %c0_139 = arith.constant 0 : index
    %c0_140 = arith.constant 0 : index
    %207 = vector.load %arg3[%c3_137, %c2_138, %c0_139, %c0_140] : memref<8x3x8x128xf32, #tpu.memory_space<vmem>>, vector<1x1x8x128xf32>
    %208 = vector.shape_cast %207 : vector<1x1x8x128xf32> to vector<8x128xf32>
    %209 = vector.shape_cast %206 : vector<8x128xf32> to vector<1x1x8x128xf32>
    tpu.vector_store %arg3[%c3_137, %c2_138, %c0_139, %c0_140], %209 {strides = array<i32>} : memref<8x3x8x128xf32, #tpu.memory_space<vmem>>, vector<1x1x8x128xf32>,
    %c4_141 = arith.constant 4 : index
    %c0_142 = arith.constant 0 : index
    %210 = memref.load %arg1[%c4_141, %c0_142] : memref<8x12xf32, #tpu.memory_space<smem>>
    %211 = vector.broadcast %210 : f32 to vector<8x128xf32>
    %212 = arith.mulf %211, %1 : vector<8x128xf32>
    %c4_143 = arith.constant 4 : index
    %c1_144 = arith.constant 1 : index
    %213 = memref.load %arg1[%c4_143, %c1_144] : memref<8x12xf32, #tpu.memory_space<smem>>
    %214 = vector.broadcast %213 : f32 to vector<8x128xf32>
    %215 = arith.mulf %214, %3 : vector<8x128xf32>
    %216 = arith.addf %212, %215 : vector<8x128xf32>
    %c4_145 = arith.constant 4 : index
    %c2_146 = arith.constant 2 : index
    %217 = memref.load %arg1[%c4_145, %c2_146] : memref<8x12xf32, #tpu.memory_space<smem>>
    %218 = vector.broadcast %217 : f32 to vector<8x128xf32>
    %219 = arith.mulf %218, %5 : vector<8x128xf32>
    %220 = arith.addf %216, %219 : vector<8x128xf32>
    %c4_147 = arith.constant 4 : index
    %c9_148 = arith.constant 9 : index
    %221 = memref.load %arg1[%c4_147, %c9_148] : memref<8x12xf32, #tpu.memory_space<smem>>
    %222 = vector.broadcast %221 : f32 to vector<8x128xf32>
    %223 = arith.addf %220, %222 : vector<8x128xf32>
    %c4_149 = arith.constant 4 : index
    %c0_150 = arith.constant 0 : index
    %c0_151 = arith.constant 0 : index
    %c0_152 = arith.constant 0 : index
    %224 = vector.load %arg3[%c4_149, %c0_150, %c0_151, %c0_152] : memref<8x3x8x128xf32, #tpu.memory_space<vmem>>, vector<1x1x8x128xf32>
    %225 = vector.shape_cast %224 : vector<1x1x8x128xf32> to vector<8x128xf32>
    %226 = vector.shape_cast %223 : vector<8x128xf32> to vector<1x1x8x128xf32>
    tpu.vector_store %arg3[%c4_149, %c0_150, %c0_151, %c0_152], %226 {strides = array<i32>} : memref<8x3x8x128xf32, #tpu.memory_space<vmem>>, vector<1x1x8x128xf32>,
    %c4_153 = arith.constant 4 : index
    %c3_154 = arith.constant 3 : index
    %227 = memref.load %arg1[%c4_153, %c3_154] : memref<8x12xf32, #tpu.memory_space<smem>>
    %228 = vector.broadcast %227 : f32 to vector<8x128xf32>
    %229 = arith.mulf %228, %1 : vector<8x128xf32>
    %c4_155 = arith.constant 4 : index
    %c4_156 = arith.constant 4 : index
    %230 = memref.load %arg1[%c4_155, %c4_156] : memref<8x12xf32, #tpu.memory_space<smem>>
    %231 = vector.broadcast %230 : f32 to vector<8x128xf32>
    %232 = arith.mulf %231, %3 : vector<8x128xf32>
    %233 = arith.addf %229, %232 : vector<8x128xf32>
    %c4_157 = arith.constant 4 : index
    %c5_158 = arith.constant 5 : index
    %234 = memref.load %arg1[%c4_157, %c5_158] : memref<8x12xf32, #tpu.memory_space<smem>>
    %235 = vector.broadcast %234 : f32 to vector<8x128xf32>
    %236 = arith.mulf %235, %5 : vector<8x128xf32>
    %237 = arith.addf %233, %236 : vector<8x128xf32>
    %c4_159 = arith.constant 4 : index
    %c10_160 = arith.constant 10 : index
    %238 = memref.load %arg1[%c4_159, %c10_160] : memref<8x12xf32, #tpu.memory_space<smem>>
    %239 = vector.broadcast %238 : f32 to vector<8x128xf32>
    %240 = arith.addf %237, %239 : vector<8x128xf32>
    %c4_161 = arith.constant 4 : index
    %c1_162 = arith.constant 1 : index
    %c0_163 = arith.constant 0 : index
    %c0_164 = arith.constant 0 : index
    %241 = vector.load %arg3[%c4_161, %c1_162, %c0_163, %c0_164] : memref<8x3x8x128xf32, #tpu.memory_space<vmem>>, vector<1x1x8x128xf32>
    %242 = vector.shape_cast %241 : vector<1x1x8x128xf32> to vector<8x128xf32>
    %243 = vector.shape_cast %240 : vector<8x128xf32> to vector<1x1x8x128xf32>
    tpu.vector_store %arg3[%c4_161, %c1_162, %c0_163, %c0_164], %243 {strides = array<i32>} : memref<8x3x8x128xf32, #tpu.memory_space<vmem>>, vector<1x1x8x128xf32>,
    %c4_165 = arith.constant 4 : index
    %c6_166 = arith.constant 6 : index
    %244 = memref.load %arg1[%c4_165, %c6_166] : memref<8x12xf32, #tpu.memory_space<smem>>
    %245 = vector.broadcast %244 : f32 to vector<8x128xf32>
    %246 = arith.mulf %245, %1 : vector<8x128xf32>
    %c4_167 = arith.constant 4 : index
    %c7_168 = arith.constant 7 : index
    %247 = memref.load %arg1[%c4_167, %c7_168] : memref<8x12xf32, #tpu.memory_space<smem>>
    %248 = vector.broadcast %247 : f32 to vector<8x128xf32>
    %249 = arith.mulf %248, %3 : vector<8x128xf32>
    %250 = arith.addf %246, %249 : vector<8x128xf32>
    %c4_169 = arith.constant 4 : index
    %c8_170 = arith.constant 8 : index
    %251 = memref.load %arg1[%c4_169, %c8_170] : memref<8x12xf32, #tpu.memory_space<smem>>
    %252 = vector.broadcast %251 : f32 to vector<8x128xf32>
    %253 = arith.mulf %252, %5 : vector<8x128xf32>
    %254 = arith.addf %250, %253 : vector<8x128xf32>
    %c4_171 = arith.constant 4 : index
    %c11_172 = arith.constant 11 : index
    %255 = memref.load %arg1[%c4_171, %c11_172] : memref<8x12xf32, #tpu.memory_space<smem>>
    %256 = vector.broadcast %255 : f32 to vector<8x128xf32>
    %257 = arith.addf %254, %256 : vector<8x128xf32>
    %c4_173 = arith.constant 4 : index
    %c2_174 = arith.constant 2 : index
    %c0_175 = arith.constant 0 : index
    %c0_176 = arith.constant 0 : index
    %258 = vector.load %arg3[%c4_173, %c2_174, %c0_175, %c0_176] : memref<8x3x8x128xf32, #tpu.memory_space<vmem>>, vector<1x1x8x128xf32>
    %259 = vector.shape_cast %258 : vector<1x1x8x128xf32> to vector<8x128xf32>
    %260 = vector.shape_cast %257 : vector<8x128xf32> to vector<1x1x8x128xf32>
    tpu.vector_store %arg3[%c4_173, %c2_174, %c0_175, %c0_176], %260 {strides = array<i32>} : memref<8x3x8x128xf32, #tpu.memory_space<vmem>>, vector<1x1x8x128xf32>,
    %c5_177 = arith.constant 5 : index
    %c0_178 = arith.constant 0 : index
    %261 = memref.load %arg1[%c5_177, %c0_178] : memref<8x12xf32, #tpu.memory_space<smem>>
    %262 = vector.broadcast %261 : f32 to vector<8x128xf32>
    %263 = arith.mulf %262, %1 : vector<8x128xf32>
    %c5_179 = arith.constant 5 : index
    %c1_180 = arith.constant 1 : index
    %264 = memref.load %arg1[%c5_179, %c1_180] : memref<8x12xf32, #tpu.memory_space<smem>>
    %265 = vector.broadcast %264 : f32 to vector<8x128xf32>
    %266 = arith.mulf %265, %3 : vector<8x128xf32>
    %267 = arith.addf %263, %266 : vector<8x128xf32>
    %c5_181 = arith.constant 5 : index
    %c2_182 = arith.constant 2 : index
    %268 = memref.load %arg1[%c5_181, %c2_182] : memref<8x12xf32, #tpu.memory_space<smem>>
    %269 = vector.broadcast %268 : f32 to vector<8x128xf32>
    %270 = arith.mulf %269, %5 : vector<8x128xf32>
    %271 = arith.addf %267, %270 : vector<8x128xf32>
    %c5_183 = arith.constant 5 : index
    %c9_184 = arith.constant 9 : index
    %272 = memref.load %arg1[%c5_183, %c9_184] : memref<8x12xf32, #tpu.memory_space<smem>>
    %273 = vector.broadcast %272 : f32 to vector<8x128xf32>
    %274 = arith.addf %271, %273 : vector<8x128xf32>
    %c5_185 = arith.constant 5 : index
    %c0_186 = arith.constant 0 : index
    %c0_187 = arith.constant 0 : index
    %c0_188 = arith.constant 0 : index
    %275 = vector.load %arg3[%c5_185, %c0_186, %c0_187, %c0_188] : memref<8x3x8x128xf32, #tpu.memory_space<vmem>>, vector<1x1x8x128xf32>
    %276 = vector.shape_cast %275 : vector<1x1x8x128xf32> to vector<8x128xf32>
    %277 = vector.shape_cast %274 : vector<8x128xf32> to vector<1x1x8x128xf32>
    tpu.vector_store %arg3[%c5_185, %c0_186, %c0_187, %c0_188], %277 {strides = array<i32>} : memref<8x3x8x128xf32, #tpu.memory_space<vmem>>, vector<1x1x8x128xf32>,
    %c5_189 = arith.constant 5 : index
    %c3_190 = arith.constant 3 : index
    %278 = memref.load %arg1[%c5_189, %c3_190] : memref<8x12xf32, #tpu.memory_space<smem>>
    %279 = vector.broadcast %278 : f32 to vector<8x128xf32>
    %280 = arith.mulf %279, %1 : vector<8x128xf32>
    %c5_191 = arith.constant 5 : index
    %c4_192 = arith.constant 4 : index
    %281 = memref.load %arg1[%c5_191, %c4_192] : memref<8x12xf32, #tpu.memory_space<smem>>
    %282 = vector.broadcast %281 : f32 to vector<8x128xf32>
    %283 = arith.mulf %282, %3 : vector<8x128xf32>
    %284 = arith.addf %280, %283 : vector<8x128xf32>
    %c5_193 = arith.constant 5 : index
    %c5_194 = arith.constant 5 : index
    %285 = memref.load %arg1[%c5_193, %c5_194] : memref<8x12xf32, #tpu.memory_space<smem>>
    %286 = vector.broadcast %285 : f32 to vector<8x128xf32>
    %287 = arith.mulf %286, %5 : vector<8x128xf32>
    %288 = arith.addf %284, %287 : vector<8x128xf32>
    %c5_195 = arith.constant 5 : index
    %c10_196 = arith.constant 10 : index
    %289 = memref.load %arg1[%c5_195, %c10_196] : memref<8x12xf32, #tpu.memory_space<smem>>
    %290 = vector.broadcast %289 : f32 to vector<8x128xf32>
    %291 = arith.addf %288, %290 : vector<8x128xf32>
    %c5_197 = arith.constant 5 : index
    %c1_198 = arith.constant 1 : index
    %c0_199 = arith.constant 0 : index
    %c0_200 = arith.constant 0 : index
    %292 = vector.load %arg3[%c5_197, %c1_198, %c0_199, %c0_200] : memref<8x3x8x128xf32, #tpu.memory_space<vmem>>, vector<1x1x8x128xf32>
    %293 = vector.shape_cast %292 : vector<1x1x8x128xf32> to vector<8x128xf32>
    %294 = vector.shape_cast %291 : vector<8x128xf32> to vector<1x1x8x128xf32>
    tpu.vector_store %arg3[%c5_197, %c1_198, %c0_199, %c0_200], %294 {strides = array<i32>} : memref<8x3x8x128xf32, #tpu.memory_space<vmem>>, vector<1x1x8x128xf32>,
    %c5_201 = arith.constant 5 : index
    %c6_202 = arith.constant 6 : index
    %295 = memref.load %arg1[%c5_201, %c6_202] : memref<8x12xf32, #tpu.memory_space<smem>>
    %296 = vector.broadcast %295 : f32 to vector<8x128xf32>
    %297 = arith.mulf %296, %1 : vector<8x128xf32>
    %c5_203 = arith.constant 5 : index
    %c7_204 = arith.constant 7 : index
    %298 = memref.load %arg1[%c5_203, %c7_204] : memref<8x12xf32, #tpu.memory_space<smem>>
    %299 = vector.broadcast %298 : f32 to vector<8x128xf32>
    %300 = arith.mulf %299, %3 : vector<8x128xf32>
    %301 = arith.addf %297, %300 : vector<8x128xf32>
    %c5_205 = arith.constant 5 : index
    %c8_206 = arith.constant 8 : index
    %302 = memref.load %arg1[%c5_205, %c8_206] : memref<8x12xf32, #tpu.memory_space<smem>>
    %303 = vector.broadcast %302 : f32 to vector<8x128xf32>
    %304 = arith.mulf %303, %5 : vector<8x128xf32>
    %305 = arith.addf %301, %304 : vector<8x128xf32>
    %c5_207 = arith.constant 5 : index
    %c11_208 = arith.constant 11 : index
    %306 = memref.load %arg1[%c5_207, %c11_208] : memref<8x12xf32, #tpu.memory_space<smem>>
    %307 = vector.broadcast %306 : f32 to vector<8x128xf32>
    %308 = arith.addf %305, %307 : vector<8x128xf32>
    %c5_209 = arith.constant 5 : index
    %c2_210 = arith.constant 2 : index
    %c0_211 = arith.constant 0 : index
    %c0_212 = arith.constant 0 : index
    %309 = vector.load %arg3[%c5_209, %c2_210, %c0_211, %c0_212] : memref<8x3x8x128xf32, #tpu.memory_space<vmem>>, vector<1x1x8x128xf32>
    %310 = vector.shape_cast %309 : vector<1x1x8x128xf32> to vector<8x128xf32>
    %311 = vector.shape_cast %308 : vector<8x128xf32> to vector<1x1x8x128xf32>
    tpu.vector_store %arg3[%c5_209, %c2_210, %c0_211, %c0_212], %311 {strides = array<i32>} : memref<8x3x8x128xf32, #tpu.memory_space<vmem>>, vector<1x1x8x128xf32>,
    %c6_213 = arith.constant 6 : index
    %c0_214 = arith.constant 0 : index
    %312 = memref.load %arg1[%c6_213, %c0_214] : memref<8x12xf32, #tpu.memory_space<smem>>
    %313 = vector.broadcast %312 : f32 to vector<8x128xf32>
    %314 = arith.mulf %313, %1 : vector<8x128xf32>
    %c6_215 = arith.constant 6 : index
    %c1_216 = arith.constant 1 : index
    %315 = memref.load %arg1[%c6_215, %c1_216] : memref<8x12xf32, #tpu.memory_space<smem>>
    %316 = vector.broadcast %315 : f32 to vector<8x128xf32>
    %317 = arith.mulf %316, %3 : vector<8x128xf32>
    %318 = arith.addf %314, %317 : vector<8x128xf32>
    %c6_217 = arith.constant 6 : index
    %c2_218 = arith.constant 2 : index
    %319 = memref.load %arg1[%c6_217, %c2_218] : memref<8x12xf32, #tpu.memory_space<smem>>
    %320 = vector.broadcast %319 : f32 to vector<8x128xf32>
    %321 = arith.mulf %320, %5 : vector<8x128xf32>
    %322 = arith.addf %318, %321 : vector<8x128xf32>
    %c6_219 = arith.constant 6 : index
    %c9_220 = arith.constant 9 : index
    %323 = memref.load %arg1[%c6_219, %c9_220] : memref<8x12xf32, #tpu.memory_space<smem>>
    %324 = vector.broadcast %323 : f32 to vector<8x128xf32>
    %325 = arith.addf %322, %324 : vector<8x128xf32>
    %c6_221 = arith.constant 6 : index
    %c0_222 = arith.constant 0 : index
    %c0_223 = arith.constant 0 : index
    %c0_224 = arith.constant 0 : index
    %326 = vector.load %arg3[%c6_221, %c0_222, %c0_223, %c0_224] : memref<8x3x8x128xf32, #tpu.memory_space<vmem>>, vector<1x1x8x128xf32>
    %327 = vector.shape_cast %326 : vector<1x1x8x128xf32> to vector<8x128xf32>
    %328 = vector.shape_cast %325 : vector<8x128xf32> to vector<1x1x8x128xf32>
    tpu.vector_store %arg3[%c6_221, %c0_222, %c0_223, %c0_224], %328 {strides = array<i32>} : memref<8x3x8x128xf32, #tpu.memory_space<vmem>>, vector<1x1x8x128xf32>,
    %c6_225 = arith.constant 6 : index
    %c3_226 = arith.constant 3 : index
    %329 = memref.load %arg1[%c6_225, %c3_226] : memref<8x12xf32, #tpu.memory_space<smem>>
    %330 = vector.broadcast %329 : f32 to vector<8x128xf32>
    %331 = arith.mulf %330, %1 : vector<8x128xf32>
    %c6_227 = arith.constant 6 : index
    %c4_228 = arith.constant 4 : index
    %332 = memref.load %arg1[%c6_227, %c4_228] : memref<8x12xf32, #tpu.memory_space<smem>>
    %333 = vector.broadcast %332 : f32 to vector<8x128xf32>
    %334 = arith.mulf %333, %3 : vector<8x128xf32>
    %335 = arith.addf %331, %334 : vector<8x128xf32>
    %c6_229 = arith.constant 6 : index
    %c5_230 = arith.constant 5 : index
    %336 = memref.load %arg1[%c6_229, %c5_230] : memref<8x12xf32, #tpu.memory_space<smem>>
    %337 = vector.broadcast %336 : f32 to vector<8x128xf32>
    %338 = arith.mulf %337, %5 : vector<8x128xf32>
    %339 = arith.addf %335, %338 : vector<8x128xf32>
    %c6_231 = arith.constant 6 : index
    %c10_232 = arith.constant 10 : index
    %340 = memref.load %arg1[%c6_231, %c10_232] : memref<8x12xf32, #tpu.memory_space<smem>>
    %341 = vector.broadcast %340 : f32 to vector<8x128xf32>
    %342 = arith.addf %339, %341 : vector<8x128xf32>
    %c6_233 = arith.constant 6 : index
    %c1_234 = arith.constant 1 : index
    %c0_235 = arith.constant 0 : index
    %c0_236 = arith.constant 0 : index
    %343 = vector.load %arg3[%c6_233, %c1_234, %c0_235, %c0_236] : memref<8x3x8x128xf32, #tpu.memory_space<vmem>>, vector<1x1x8x128xf32>
    %344 = vector.shape_cast %343 : vector<1x1x8x128xf32> to vector<8x128xf32>
    %345 = vector.shape_cast %342 : vector<8x128xf32> to vector<1x1x8x128xf32>
    tpu.vector_store %arg3[%c6_233, %c1_234, %c0_235, %c0_236], %345 {strides = array<i32>} : memref<8x3x8x128xf32, #tpu.memory_space<vmem>>, vector<1x1x8x128xf32>,
    %c6_237 = arith.constant 6 : index
    %c6_238 = arith.constant 6 : index
    %346 = memref.load %arg1[%c6_237, %c6_238] : memref<8x12xf32, #tpu.memory_space<smem>>
    %347 = vector.broadcast %346 : f32 to vector<8x128xf32>
    %348 = arith.mulf %347, %1 : vector<8x128xf32>
    %c6_239 = arith.constant 6 : index
    %c7_240 = arith.constant 7 : index
    %349 = memref.load %arg1[%c6_239, %c7_240] : memref<8x12xf32, #tpu.memory_space<smem>>
    %350 = vector.broadcast %349 : f32 to vector<8x128xf32>
    %351 = arith.mulf %350, %3 : vector<8x128xf32>
    %352 = arith.addf %348, %351 : vector<8x128xf32>
    %c6_241 = arith.constant 6 : index
    %c8_242 = arith.constant 8 : index
    %353 = memref.load %arg1[%c6_241, %c8_242] : memref<8x12xf32, #tpu.memory_space<smem>>
    %354 = vector.broadcast %353 : f32 to vector<8x128xf32>
    %355 = arith.mulf %354, %5 : vector<8x128xf32>
    %356 = arith.addf %352, %355 : vector<8x128xf32>
    %c6_243 = arith.constant 6 : index
    %c11_244 = arith.constant 11 : index
    %357 = memref.load %arg1[%c6_243, %c11_244] : memref<8x12xf32, #tpu.memory_space<smem>>
    %358 = vector.broadcast %357 : f32 to vector<8x128xf32>
    %359 = arith.addf %356, %358 : vector<8x128xf32>
    %c6_245 = arith.constant 6 : index
    %c2_246 = arith.constant 2 : index
    %c0_247 = arith.constant 0 : index
    %c0_248 = arith.constant 0 : index
    %360 = vector.load %arg3[%c6_245, %c2_246, %c0_247, %c0_248] : memref<8x3x8x128xf32, #tpu.memory_space<vmem>>, vector<1x1x8x128xf32>
    %361 = vector.shape_cast %360 : vector<1x1x8x128xf32> to vector<8x128xf32>
    %362 = vector.shape_cast %359 : vector<8x128xf32> to vector<1x1x8x128xf32>
    tpu.vector_store %arg3[%c6_245, %c2_246, %c0_247, %c0_248], %362 {strides = array<i32>} : memref<8x3x8x128xf32, #tpu.memory_space<vmem>>, vector<1x1x8x128xf32>,
    %c7_249 = arith.constant 7 : index
    %c0_250 = arith.constant 0 : index
    %363 = memref.load %arg1[%c7_249, %c0_250] : memref<8x12xf32, #tpu.memory_space<smem>>
    %364 = vector.broadcast %363 : f32 to vector<8x128xf32>
    %365 = arith.mulf %364, %1 : vector<8x128xf32>
    %c7_251 = arith.constant 7 : index
    %c1_252 = arith.constant 1 : index
    %366 = memref.load %arg1[%c7_251, %c1_252] : memref<8x12xf32, #tpu.memory_space<smem>>
    %367 = vector.broadcast %366 : f32 to vector<8x128xf32>
    %368 = arith.mulf %367, %3 : vector<8x128xf32>
    %369 = arith.addf %365, %368 : vector<8x128xf32>
    %c7_253 = arith.constant 7 : index
    %c2_254 = arith.constant 2 : index
    %370 = memref.load %arg1[%c7_253, %c2_254] : memref<8x12xf32, #tpu.memory_space<smem>>
    %371 = vector.broadcast %370 : f32 to vector<8x128xf32>
    %372 = arith.mulf %371, %5 : vector<8x128xf32>
    %373 = arith.addf %369, %372 : vector<8x128xf32>
    %c7_255 = arith.constant 7 : index
    %c9_256 = arith.constant 9 : index
    %374 = memref.load %arg1[%c7_255, %c9_256] : memref<8x12xf32, #tpu.memory_space<smem>>
    %375 = vector.broadcast %374 : f32 to vector<8x128xf32>
    %376 = arith.addf %373, %375 : vector<8x128xf32>
    %c7_257 = arith.constant 7 : index
    %c0_258 = arith.constant 0 : index
    %c0_259 = arith.constant 0 : index
    %c0_260 = arith.constant 0 : index
    %377 = vector.load %arg3[%c7_257, %c0_258, %c0_259, %c0_260] : memref<8x3x8x128xf32, #tpu.memory_space<vmem>>, vector<1x1x8x128xf32>
    %378 = vector.shape_cast %377 : vector<1x1x8x128xf32> to vector<8x128xf32>
    %379 = vector.shape_cast %376 : vector<8x128xf32> to vector<1x1x8x128xf32>
    tpu.vector_store %arg3[%c7_257, %c0_258, %c0_259, %c0_260], %379 {strides = array<i32>} : memref<8x3x8x128xf32, #tpu.memory_space<vmem>>, vector<1x1x8x128xf32>,
    %c7_261 = arith.constant 7 : index
    %c3_262 = arith.constant 3 : index
    %380 = memref.load %arg1[%c7_261, %c3_262] : memref<8x12xf32, #tpu.memory_space<smem>>
    %381 = vector.broadcast %380 : f32 to vector<8x128xf32>
    %382 = arith.mulf %381, %1 : vector<8x128xf32>
    %c7_263 = arith.constant 7 : index
    %c4_264 = arith.constant 4 : index
    %383 = memref.load %arg1[%c7_263, %c4_264] : memref<8x12xf32, #tpu.memory_space<smem>>
    %384 = vector.broadcast %383 : f32 to vector<8x128xf32>
    %385 = arith.mulf %384, %3 : vector<8x128xf32>
    %386 = arith.addf %382, %385 : vector<8x128xf32>
    %c7_265 = arith.constant 7 : index
    %c5_266 = arith.constant 5 : index
    %387 = memref.load %arg1[%c7_265, %c5_266] : memref<8x12xf32, #tpu.memory_space<smem>>
    %388 = vector.broadcast %387 : f32 to vector<8x128xf32>
    %389 = arith.mulf %388, %5 : vector<8x128xf32>
    %390 = arith.addf %386, %389 : vector<8x128xf32>
    %c7_267 = arith.constant 7 : index
    %c10_268 = arith.constant 10 : index
    %391 = memref.load %arg1[%c7_267, %c10_268] : memref<8x12xf32, #tpu.memory_space<smem>>
    %392 = vector.broadcast %391 : f32 to vector<8x128xf32>
    %393 = arith.addf %390, %392 : vector<8x128xf32>
    %c7_269 = arith.constant 7 : index
    %c1_270 = arith.constant 1 : index
    %c0_271 = arith.constant 0 : index
    %c0_272 = arith.constant 0 : index
    %394 = vector.load %arg3[%c7_269, %c1_270, %c0_271, %c0_272] : memref<8x3x8x128xf32, #tpu.memory_space<vmem>>, vector<1x1x8x128xf32>
    %395 = vector.shape_cast %394 : vector<1x1x8x128xf32> to vector<8x128xf32>
    %396 = vector.shape_cast %393 : vector<8x128xf32> to vector<1x1x8x128xf32>
    tpu.vector_store %arg3[%c7_269, %c1_270, %c0_271, %c0_272], %396 {strides = array<i32>} : memref<8x3x8x128xf32, #tpu.memory_space<vmem>>, vector<1x1x8x128xf32>,
    %c7_273 = arith.constant 7 : index
    %c6_274 = arith.constant 6 : index
    %397 = memref.load %arg1[%c7_273, %c6_274] : memref<8x12xf32, #tpu.memory_space<smem>>
    %398 = vector.broadcast %397 : f32 to vector<8x128xf32>
    %399 = arith.mulf %398, %1 : vector<8x128xf32>
    %c7_275 = arith.constant 7 : index
    %c7_276 = arith.constant 7 : index
    %400 = memref.load %arg1[%c7_275, %c7_276] : memref<8x12xf32, #tpu.memory_space<smem>>
    %401 = vector.broadcast %400 : f32 to vector<8x128xf32>
    %402 = arith.mulf %401, %3 : vector<8x128xf32>
    %403 = arith.addf %399, %402 : vector<8x128xf32>
    %c7_277 = arith.constant 7 : index
    %c8_278 = arith.constant 8 : index
    %404 = memref.load %arg1[%c7_277, %c8_278] : memref<8x12xf32, #tpu.memory_space<smem>>
    %405 = vector.broadcast %404 : f32 to vector<8x128xf32>
    %406 = arith.mulf %405, %5 : vector<8x128xf32>
    %407 = arith.addf %403, %406 : vector<8x128xf32>
    %c7_279 = arith.constant 7 : index
    %c11_280 = arith.constant 11 : index
    %408 = memref.load %arg1[%c7_279, %c11_280] : memref<8x12xf32, #tpu.memory_space<smem>>
    %409 = vector.broadcast %408 : f32 to vector<8x128xf32>
    %410 = arith.addf %407, %409 : vector<8x128xf32>
    %c7_281 = arith.constant 7 : index
    %c2_282 = arith.constant 2 : index
    %c0_283 = arith.constant 0 : index
    %c0_284 = arith.constant 0 : index
    %411 = vector.load %arg3[%c7_281, %c2_282, %c0_283, %c0_284] : memref<8x3x8x128xf32, #tpu.memory_space<vmem>>, vector<1x1x8x128xf32>
    %412 = vector.shape_cast %411 : vector<1x1x8x128xf32> to vector<8x128xf32>
    %413 = vector.shape_cast %410 : vector<8x128xf32> to vector<1x1x8x128xf32>
    tpu.vector_store %arg3[%c7_281, %c2_282, %c0_283, %c0_284], %413 {strides = array<i32>} : memref<8x3x8x128xf32, #tpu.memory_space<vmem>>, vector<1x1x8x128xf32>,
    return
  }
  func.func @transform_0(%arg0: i32) -> (i32, i32) {
    %c0_i32 = arith.constant 0 : i32
    %c0_i32_0 = arith.constant 0 : i32
    %c0_i32_1 = arith.constant 0 : i32
    return %c0_i32, %c0_i32_0 : i32, i32
  }
  func.func @transform_1(%arg0: i32) -> (i32, i32, i32) {
    %c0_i32 = arith.constant 0 : i32
    %c0_i32_0 = arith.constant 0 : i32
    %c0_i32_1 = arith.constant 0 : i32
    return %c0_i32, %arg0, %c0_i32_0 : i32, i32, i32
  }
  func.func @transform_2(%arg0: i32) -> (i32, i32, i32, i32) {
    %c0_i32 = arith.constant 0 : i32
    %c0_i32_0 = arith.constant 0 : i32
    %c0_i32_1 = arith.constant 0 : i32
    %c0_i32_2 = arith.constant 0 : i32
    return %c0_i32, %c0_i32_0, %arg0, %c0_i32_1 : i32, i32, i32, i32
  }
}

</mosaic_0001>

<llo_original>
// kernel: _transform_points_pallas.1
$region0: #{_transform_points_pallas.1}
  #allocation0 [shape = 'u32[]', space=smem, size = 0x4, offset = 0x4, fixed_abs, tag = 'smem constant byte address 0x4 - core index']
  #allocation1 [shape = 'u32[144,128]{1,0:T(1,128)}', space=vmem, size = 0x12000, scoped, tag = 'internal scratch']
  %s0 = inlined_call_operand.vmem [shape: f32[8,12], index: 0, kind: input, shape index: {}]
  %s1 = inlined_call_operand.vmem [shape: f32[3,32,128], index: 1, kind: input, shape index: {}]
  %s2 = inlined_call_operand.vmem [shape: f32[8,3,32,128], index: 2, kind: output, shape index: {}]
  %s3 = sld [smem:[#allocation0]]
  $region117: #{_transform_points_pallas.1} parent=0
    _
  %s5 = ssub.s32 1, %s3
  %s6 = scalar_select 0, %s5, %s3
  $region1: #{_transform_points_pallas.1} parent=0
    #allocation2 [shape = 'u8[4096]{0}', space=smem, size = 0x1000, scoped, tag = 'input window, operand 0, single buffered']
    #allocation3 [shape = 's32[2]{0}', space=sflag, size = 0x8, scoped, tag = 'scoped memory for _transform_points_pallas.1']
    #allocation4 [shape = 'u8[24576]{0}', space=vmem, size = 0x6000, scoped, tag = 'input window, operand 1']
    #allocation5 [shape = 'u8[196608]{0}', space=vmem, size = 0x30000, scoped, tag = 'output window, operand 0']
    %7 = vsyncpa [#allocation3], 0
    loop: start=0, step=1, limit=6
    $region2: #{_transform_points_pallas.1} parent=1 // loop_pre_header
      _
    $region3: #{_transform_points_pallas.1} parent=1 // loop_header
      %s9 = sphi 0, %s13
      %p10 = scmp.ge.s32.totalorder %s9, 6
      %s17 = sphi 0, %s17
      %s19 = sphi 0, %s17
      %s20 = sphi 0, %s19
      %s34 = sphi 0, %s20
      %s40 = sphi 0, %s42
      %s43 = sphi 0, %s40
      %s44 = sphi 0, %s43
      %s60 = sphi 0, %s44
      %s66 = sphi 0, %s68
      %s69 = sphi 0, %s66
      %s70 = sphi 0, %s69
      %s86 = sphi 0, %s70
    $region4: #{_transform_points_pallas.1} parent=1 // loop_header_branch
      %12 = sbr.rel (%p10) target = $region8
    $region5: #{_transform_points_pallas.1} parent=1 // loop_body
      %s14 = ssub.s32 %s9, 1
      %s15 = ssub.s32 %s9, 2
      %s16 = sadd.s32 %s9, 1
      %s18 = sadd.s32 %s17, 1
      %p21 = scmp.eq.s32.totalorder %s9, 3
      %p22 = scmp.ne.s32.totalorder %s17, %s19
      %p23 = scmp.eq.s32.totalorder %s9, 0
      %p24 = por %p22, %p23
      %p25 = scmp.ne.s32.totalorder %s17, %s19
      %p26 = scmp.eq.s32.totalorder %s14, 3
      %p27 = por %p25, %p26
      %p28 = scmp.ne.s32.totalorder %s19, %s20
      %p29 = scmp.eq.s32.totalorder %s14, 0
      %p30 = por %p28, %p29
      %p31 = scmp.ne.s32.totalorder %s19, %s20
      %p32 = scmp.eq.s32.totalorder %s15, 3
      %p33 = por %p31, %p32
      %p35 = scmp.ne.s32.totalorder %s20, %s34
      %p36 = scmp.eq.s32.totalorder %s15, 0
      %p37 = por %p35, %p36
      %s38 = ssub.s32 %s9, %s16
      %p39 = scmp.eq.s32.totalorder %s38, 0
      %s41 = sadd.s32 %s40, 1
      %s42 = scalar_select %p39, %s40, %s41
      %p45 = pneg %p39
      %p46 = scmp.eq.s32.totalorder %s9, 3
      %p47 = por %p45, %p46
      %p48 = scmp.ne.s32.totalorder %s40, %s43
      %p49 = scmp.eq.s32.totalorder %s9, 0
      %p50 = por %p48, %p49
      %p51 = scmp.ne.s32.totalorder %s40, %s43
      %p52 = scmp.eq.s32.totalorder %s14, 3
      %p53 = por %p51, %p52
      %p54 = scmp.ne.s32.totalorder %s43, %s44
      %p55 = scmp.eq.s32.totalorder %s14, 0
      %p56 = por %p54, %p55
      %p57 = scmp.ne.s32.totalorder %s43, %s44
      %p58 = scmp.eq.s32.totalorder %s15, 3
      %p59 = por %p57, %p58
      %p61 = scmp.ne.s32.totalorder %s44, %s60
      %p62 = scmp.eq.s32.totalorder %s15, 0
      %p63 = por %p61, %p62
      %s64 = ssub.s32 %s9, %s16
      %p65 = scmp.eq.s32.totalorder %s64, 0
      %s67 = sadd.s32 %s66, 1
      %s68 = scalar_select %p65, %s66, %s67
      %p71 = pneg %p65
      %p72 = scmp.eq.s32.totalorder %s9, 3
      %p73 = por %p71, %p72
      %p74 = scmp.ne.s32.totalorder %s66, %s69
      %p75 = scmp.eq.s32.totalorder %s9, 0
      %p76 = por %p74, %p75
      %p77 = scmp.ne.s32.totalorder %s66, %s69
      %p78 = scmp.eq.s32.totalorder %s14, 3
      %p79 = por %p77, %p78
      %p80 = scmp.ne.s32.totalorder %s69, %s70
      %p81 = scmp.eq.s32.totalorder %s14, 0
      %p82 = por %p80, %p81
      %p83 = scmp.ne.s32.totalorder %s69, %s70
      %p84 = scmp.eq.s32.totalorder %s15, 3
      %p85 = por %p83, %p84
      %p87 = scmp.ne.s32.totalorder %s70, %s86
      %p88 = scmp.eq.s32.totalorder %s15, 0
      %p89 = por %p87, %p88
      %p90 = scmp.le.s32.totalorder 1, %s9
      %p91 = scmp.lt.s32.totalorder %s9, 5
      %p92 = pnand %p90, %p91
      %p93 = pneg %p92
      // Predicated region
      $region9: #{_transform_points_pallas.1} parent=5 // pred_check
        _
      $region10: #{_transform_points_pallas.1} parent=5 // pred_check_branch
        %95 = sbr.rel (%p92) target = $region12
      $region11: #{_transform_points_pallas.1} parent=5 // pred_region
        %s96 = ssub.s32 %s9, 1
        // Predicated region
        $region13: #{_transform_points_pallas.1} parent=11 // pred_check
          %p97 = pneg %p30
        $region14: #{_transform_points_pallas.1} parent=11 // pred_check_branch
          %99 = sbr.rel (%p97) target = $region16
        $region15: #{_transform_points_pallas.1} parent=11 // pred_region
          %s101 = ssub.s32 128, 128
          %102 = vsyncadd [#allocation3], %s101
          %s104 = sshll.u32 %s0, 4
          %s105 = int_to_ptr.vmem [resolvable:$true] %s104
          %107 = dma.vmem_to_smem %s105, 128, [#allocation2], [#allocation3]
        $region16: #{_transform_points_pallas.1} parent=11 // pred_fallthru
          _
      $region12: #{_transform_points_pallas.1} parent=5 // pred_fallthru
        _
      %p108 = scmp.lt.s32.totalorder %s9, 4
      // Predicated region
      $region17: #{_transform_points_pallas.1} parent=5 // pred_check
        %p109 = pneg %p108
      $region18: #{_transform_points_pallas.1} parent=5 // pred_check_branch
        %111 = sbr.rel (%p109) target = $region20
      $region19: #{_transform_points_pallas.1} parent=5 // pred_region
        // Predicated region
        $region21: #{_transform_points_pallas.1} parent=19 // pred_check
          %p112 = pneg %p50
        $region22: #{_transform_points_pallas.1} parent=19 // pred_check_branch
          %114 = sbr.rel (%p112) target = $region24
        $region23: #{_transform_points_pallas.1} parent=19 // pred_region
          %s115 = sand.u32 %s40, 1
          %s116 = sand.u32 %s40, 1
          %s117 = smul.addr %s116, 24
          %s118 = scalar_lea.vmem [#allocation4], %s117
          %s119 = smul.addr %s9, 8
          %s120 = scalar_lea.vmem %s1, %s119
          // Predicated region
          $region25: #{_transform_points_pallas.1} parent=23 // pred_check
            _
          $region26: #{_transform_points_pallas.1} parent=23 // pred_check_branch
            %122 = sbr.rel (0) target = $region28
          $region27: #{_transform_points_pallas.1} parent=23 // pred_region
            // Predicated region
            $region29: #{_transform_points_pallas.1} parent=27 // pred_check
              _
            $region30: #{_transform_points_pallas.1} parent=27 // pred_check_branch
              %124 = sbr.rel (0) target = $region32
            $region31: #{_transform_points_pallas.1} parent=27 // pred_region
              // Predicated region
              $region44: #{_transform_points_pallas.1} parent=31 // pred_check
                _
              $region45: #{_transform_points_pallas.1} parent=31 // pred_check_branch
                %143 = sbr.rel (0) target = $region47
              $region46: #{_transform_points_pallas.1} parent=31 // pred_region
                loop: start=0, step=1, limit=1
                $region48: #{_transform_points_pallas.1} parent=46 // loop_pre_header
                  _
                $region49: #{_transform_points_pallas.1} parent=46 // loop_header
                  %s145 = sphi 0, %s149
                  %p146 = scmp.ge.s32.totalorder %s145, 1
                  %s150 = sphi %s120, %s120
                  %s151 = sphi %s118, %s118
                $region50: #{_transform_points_pallas.1} parent=46 // loop_header_branch
                  %148 = sbr.rel (%p146) target = $region54
                $region51: #{_transform_points_pallas.1} parent=46 // loop_body
                  %v152 = vld [vmem:[%s150] sm:$0xff]
                  %153 = vst [vmem:[%s151] sm:$0xff] %v152
                  %v154 = vld [vmem:[%s150 + $0x20] sm:$0xff]
                  %155 = vst [vmem:[%s151 + $0x8] sm:$0xff] %v154
                  %v156 = vld [vmem:[%s150 + $0x40] sm:$0xff]
                  %157 = vst [vmem:[%s151 + $0x10] sm:$0xff] %v156
                $region52: #{_transform_points_pallas.1} parent=46 // loop_footer
                  %s149 = sadd.s32 1, %s145
                $region53: #{_transform_points_pallas.1} parent=46 // loop_footer_branch
                  %144 = sbr.rel target = $region49
                $region54: #{_transform_points_pallas.1} parent=46 // loop_exit
                  _
              $region47: #{_transform_points_pallas.1} parent=31 // pred_fallthru
                _
              // Predicated region
              $region55: #{_transform_points_pallas.1} parent=31 // pred_check
                _
              $region56: #{_transform_points_pallas.1} parent=31 // pred_check_branch
                %159 = sbr.rel target = $region58
              $region57: #{_transform_points_pallas.1} parent=31 // pred_region
                _
              $region58: #{_transform_points_pallas.1} parent=31 // pred_fallthru
                _
            $region32: #{_transform_points_pallas.1} parent=27 // pred_fallthru
              _
            // Predicated region
            $region33: #{_transform_points_pallas.1} parent=27 // pred_check
              _
            $region34: #{_transform_points_pallas.1} parent=27 // pred_check_branch
              %126 = sbr.rel target = $region36
            $region35: #{_transform_points_pallas.1} parent=27 // pred_region
              loop: start=0, step=1, limit=1
              $region37: #{_transform_points_pallas.1} parent=35 // loop_pre_header
                _
              $region38: #{_transform_points_pallas.1} parent=35 // loop_header
                %s129 = sphi 0, %s133
                %p130 = scmp.ge.s32.totalorder %s129, 1
                %s134 = sphi %s120, %s120
                %s135 = sphi %s118, %s118
              $region39: #{_transform_points_pallas.1} parent=35 // loop_header_branch
                %132 = sbr.rel (%p130) target = $region43
              $region40: #{_transform_points_pallas.1} parent=35 // loop_body
                %v136 = vld [vmem:[%s134] sm:$0xff]
                %137 = vst [vmem:[%s135] sm:$0xff] %v136
                %v138 = vld [vmem:[%s134 + $0x20] sm:$0xff]
                %139 = vst [vmem:[%s135 + $0x8] sm:$0xff] %v138
                %v140 = vld [vmem:[%s134 + $0x40] sm:$0xff]
                %141 = vst [vmem:[%s135 + $0x10] sm:$0xff] %v140
              $region41: #{_transform_points_pallas.1} parent=35 // loop_footer
                %s133 = sadd.s32 1, %s129
              $region42: #{_transform_points_pallas.1} parent=35 // loop_footer_branch
                %128 = sbr.rel target = $region38
              $region43: #{_transform_points_pallas.1} parent=35 // loop_exit
                _
            $region36: #{_transform_points_pallas.1} parent=27 // pred_fallthru
              _
          $region28: #{_transform_points_pallas.1} parent=23 // pred_fallthru
            _
          %160 = vnop
        $region24: #{_transform_points_pallas.1} parent=19 // pred_fallthru
          _
      $region20: #{_transform_points_pallas.1} parent=5 // pred_fallthru
        _
      %p161 = scmp.le.s32.totalorder 1, %s9
      %p162 = scmp.lt.s32.totalorder %s9, 5
      %p163 = pnand %p161, %p162
      %p164 = pneg %p163
      // Predicated region
      $region59: #{_transform_points_pallas.1} parent=5 // pred_check
        _
      $region60: #{_transform_points_pallas.1} parent=5 // pred_check_branch
        %166 = sbr.rel (%p163) target = $region62
      $region61: #{_transform_points_pallas.1} parent=5 // pred_region
        %s167 = ssub.s32 %s9, 1
        // Predicated region
        $region63: #{_transform_points_pallas.1} parent=61 // pred_check
          %p168 = pneg %p30
        $region64: #{_transform_points_pallas.1} parent=61 // pred_check_branch
          %170 = sbr.rel (%p168) target = $region66
        $region65: #{_transform_points_pallas.1} parent=61 // pred_region
          %171 = dma.done [#allocation3], 128
        $region66: #{_transform_points_pallas.1} parent=61 // pred_fallthru
          _
        %s172 = sand.u32 %s43, 1
        %s173 = sand.u32 %s43, 1
        %s174 = smul.addr %s173, 24
        %s175 = scalar_lea.vmem [#allocation4], %s174
        // Predicated region
        $region67: #{_transform_points_pallas.1} parent=61 // pred_check
          %p176 = pneg %p56
        $region68: #{_transform_points_pallas.1} parent=61 // pred_check_branch
          %178 = sbr.rel (%p176) target = $region70
        $region69: #{_transform_points_pallas.1} parent=61 // pred_region
          _
        $region70: #{_transform_points_pallas.1} parent=61 // pred_fallthru
          _
        %179 = sfence
        %p180 = pneg %p30
        %p181 = pneg %p27
        %s182 = sand.u32 %s43, 1
        %s183 = sand.u32 %s43, 1
        %s184 = smul.addr %s183, 24
        %s185 = scalar_lea.vmem [#allocation4], %s184
        %p186 = pneg %p56
        %p187 = pneg %p53
        %p188 = pneg %p82
        %p189 = pneg %p79
        %s190 = sand.u32 %s69, 1
        %s191 = sand.u32 %s69, 1
        %s192 = smul.addr %s191, 192
        %s193 = scalar_lea.vmem [#allocation5], %s192
        %v194 = vld [vmem:[%s175] sm:$0xff]
        %s195 = scalar_lea.vmem %s175, 8 [#allocation4]
        %v196 = vld [vmem:[%s195] sm:$0xff]
        %s197 = scalar_lea.vmem %s175, 16 [#allocation4]
        %v198 = vld [vmem:[%s197] sm:$0xff]
        %s199 = sld [smem:[#allocation2]]
        %v200 = vstv %s199
        %v201 = vmul.f32 %v200, %v194
        %s202 = sld [smem:[#allocation2 + $0x1]]
        %v203 = vstv %s202
        %v204 = vmul.f32 %v203, %v196
        %v205 = vadd.f32 %v201, %v204
        %s206 = sld [smem:[#allocation2 + $0x2]]
        %v207 = vstv %s206
        %v208 = vmul.f32 %v207, %v198
        %v209 = vadd.f32 %v205, %v208
        %s210 = sld [smem:[#allocation2 + $0x9]]
        %v211 = vstv %s210
        %v212 = vadd.f32 %v209, %v211
        %213 = vst [vmem:[%s193] sm:$0xff] %v212
        %s214 = sld [smem:[#allocation2 + $0x3]]
        %v215 = vstv %s214
        %v216 = vmul.f32 %v215, %v194
        %s217 = sld [smem:[#allocation2 + $0x4]]
        %v218 = vstv %s217
        %v219 = vmul.f32 %v218, %v196
        %v220 = vadd.f32 %v216, %v219
        %s221 = sld [smem:[#allocation2 + $0x5]]
        %v222 = vstv %s221
        %v223 = vmul.f32 %v222, %v198
        %v224 = vadd.f32 %v220, %v223
        %s225 = sld [smem:[#allocation2 + $0xa]]
        %v226 = vstv %s225
        %v227 = vadd.f32 %v224, %v226
        %s228 = scalar_lea.vmem %s193, 8 [#allocation5]
        %229 = vst [vmem:[%s228] sm:$0xff] %v227
        %s230 = sld [smem:[#allocation2 + $0x6]]
        %v231 = vstv %s230
        %v232 = vmul.f32 %v231, %v194
        %s233 = sld [smem:[#allocation2 + $0x7]]
        %v234 = vstv %s233
        %v235 = vmul.f32 %v234, %v196
        %v236 = vadd.f32 %v232, %v235
        %s237 = sld [smem:[#allocation2 + $0x8]]
        %v238 = vstv %s237
        %v239 = vmul.f32 %v238, %v198
        %v240 = vadd.f32 %v236, %v239
        %s241 = sld [smem:[#allocation2 + $0xb]]
        %v242 = vstv %s241
        %v243 = vadd.f32 %v240, %v242
        %s244 = scalar_lea.vmem %s193, 16 [#allocation5]
        %245 = vst [vmem:[%s244] sm:$0xff] %v243
        %s246 = sld [smem:[#allocation2 + $0x80]]
        %v247 = vstv %s246
        %v248 = vmul.f32 %v247, %v194
        %s249 = sld [smem:[#allocation2 + $0x81]]
        %v250 = vstv %s249
        %v251 = vmul.f32 %v250, %v196
        %v252 = vadd.f32 %v248, %v251
        %s253 = sld [smem:[#allocation2 + $0x82]]
        %v254 = vstv %s253
        %v255 = vmul.f32 %v254, %v198
        %v256 = vadd.f32 %v252, %v255
        %s257 = sld [smem:[#allocation2 + $0x89]]
        %v258 = vstv %s257
        %v259 = vadd.f32 %v256, %v258
        %s260 = scalar_lea.vmem %s193, 24 [#allocation5]
        %261 = vst [vmem:[%s260] sm:$0xff] %v259
        %s262 = sld [smem:[#allocation2 + $0x83]]
        %v263 = vstv %s262
        %v264 = vmul.f32 %v263, %v194
        %s265 = sld [smem:[#allocation2 + $0x84]]
        %v266 = vstv %s265
        %v267 = vmul.f32 %v266, %v196
        %v268 = vadd.f32 %v264, %v267
        %s269 = sld [smem:[#allocation2 + $0x85]]
        %v270 = vstv %s269
        %v271 = vmul.f32 %v270, %v198
        %v272 = vadd.f32 %v268, %v271
        %s273 = sld [smem:[#allocation2 + $0x8a]]
        %v274 = vstv %s273
        %v275 = vadd.f32 %v272, %v274
        %s276 = scalar_lea.vmem %s193, 32 [#allocation5]
        %277 = vst [vmem:[%s276] sm:$0xff] %v275
        %s278 = sld [smem:[#allocation2 + $0x86]]
        %v279 = vstv %s278
        %v280 = vmul.f32 %v279, %v194
        %s281 = sld [smem:[#allocation2 + $0x87]]
        %v282 = vstv %s281
        %v283 = vmul.f32 %v282, %v196
        %v284 = vadd.f32 %v280, %v283
        %s285 = sld [smem:[#allocation2 + $0x88]]
        %v286 = vstv %s285
        %v287 = vmul.f32 %v286, %v198
        %v288 = vadd.f32 %v284, %v287
        %s289 = sld [smem:[#allocation2 + $0x8b]]
        %v290 = vstv %s289
        %v291 = vadd.f32 %v288, %v290
        %s292 = scalar_lea.vmem %s193, 40 [#allocation5]
        %293 = vst [vmem:[%s292] sm:$0xff] %v291
        %s294 = sld [smem:[#allocation2 + $0x100]]
        %v295 = vstv %s294
        %v296 = vmul.f32 %v295, %v194
        %s297 = sld [smem:[#allocation2 + $0x101]]
        %v298 = vstv %s297
        %v299 = vmul.f32 %v298, %v196
        %v300 = vadd.f32 %v296, %v299
        %s301 = sld [smem:[#allocation2 + $0x102]]
        %v302 = vstv %s301
        %v303 = vmul.f32 %v302, %v198
        %v304 = vadd.f32 %v300, %v303
        %s305 = sld [smem:[#allocation2 + $0x109]]
        %v306 = vstv %s305
        %v307 = vadd.f32 %v304, %v306
        %s308 = scalar_lea.vmem %s193, 48 [#allocation5]
        %309 = vst [vmem:[%s308] sm:$0xff] %v307
        %s310 = sld [smem:[#allocation2 + $0x103]]
        %v311 = vstv %s310
        %v312 = vmul.f32 %v311, %v194
        %s313 = sld [smem:[#allocation2 + $0x104]]
        %v314 = vstv %s313
        %v315 = vmul.f32 %v314, %v196
        %v316 = vadd.f32 %v312, %v315
        %s317 = sld [smem:[#allocation2 + $0x105]]
        %v318 = vstv %s317
        %v319 = vmul.f32 %v318, %v198
        %v320 = vadd.f32 %v316, %v319
        %s321 = sld [smem:[#allocation2 + $0x10a]]
        %v322 = vstv %s321
        %v323 = vadd.f32 %v320, %v322
        %s324 = scalar_lea.vmem %s193, 56 [#allocation5]
        %325 = vst [vmem:[%s324] sm:$0xff] %v323
        %s326 = sld [smem:[#allocation2 + $0x106]]
        %v327 = vstv %s326
        %v328 = vmul.f32 %v327, %v194
        %s329 = sld [smem:[#allocation2 + $0x107]]
        %v330 = vstv %s329
        %v331 = vmul.f32 %v330, %v196
        %v332 = vadd.f32 %v328, %v331
        %s333 = sld [smem:[#allocation2 + $0x108]]
        %v334 = vstv %s333
        %v335 = vmul.f32 %v334, %v198
        %v336 = vadd.f32 %v332, %v335
        %s337 = sld [smem:[#allocation2 + $0x10b]]
        %v338 = vstv %s337
        %v339 = vadd.f32 %v336, %v338
        %s340 = scalar_lea.vmem %s193, 64 [#allocation5]
        %341 = vst [vmem:[%s340] sm:$0xff] %v339
        %s342 = sld [smem:[#allocation2 + $0x180]]
        %v343 = vstv %s342
        %v344 = vmul.f32 %v343, %v194
        %s345 = sld [smem:[#allocation2 + $0x181]]
        %v346 = vstv %s345
        %v347 = vmul.f32 %v346, %v196
        %v348 = vadd.f32 %v344, %v347
        %s349 = sld [smem:[#allocation2 + $0x182]]
        %v350 = vstv %s349
        %v351 = vmul.f32 %v350, %v198
        %v352 = vadd.f32 %v348, %v351
        %s353 = sld [smem:[#allocation2 + $0x189]]
        %v354 = vstv %s353
        %v355 = vadd.f32 %v352, %v354
        %s356 = scalar_lea.vmem %s193, 72 [#allocation5]
        %357 = vst [vmem:[%s356] sm:$0xff] %v355
        %s358 = sld [smem:[#allocation2 + $0x183]]
        %v359 = vstv %s358
        %v360 = vmul.f32 %v359, %v194
        %s361 = sld [smem:[#allocation2 + $0x184]]
        %v362 = vstv %s361
        %v363 = vmul.f32 %v362, %v196
        %v364 = vadd.f32 %v360, %v363
        %s365 = sld [smem:[#allocation2 + $0x185]]
        %v366 = vstv %s365
        %v367 = vmul.f32 %v366, %v198
        %v368 = vadd.f32 %v364, %v367
        %s369 = sld [smem:[#allocation2 + $0x18a]]
        %v370 = vstv %s369
        %v371 = vadd.f32 %v368, %v370
        %s372 = scalar_lea.vmem %s193, 80 [#allocation5]
        %373 = vst [vmem:[%s372] sm:$0xff] %v371
        %s374 = sld [smem:[#allocation2 + $0x186]]
        %v375 = vstv %s374
        %v376 = vmul.f32 %v375, %v194
        %s377 = sld [smem:[#allocation2 + $0x187]]
        %v378 = vstv %s377
        %v379 = vmul.f32 %v378, %v196
        %v380 = vadd.f32 %v376, %v379
        %s381 = sld [smem:[#allocation2 + $0x188]]
        %v382 = vstv %s381
        %v383 = vmul.f32 %v382, %v198
        %v384 = vadd.f32 %v380, %v383
        %s385 = sld [smem:[#allocation2 + $0x18b]]
        %v386 = vstv %s385
        %v387 = vadd.f32 %v384, %v386
        %s388 = scalar_lea.vmem %s193, 88 [#allocation5]
        %389 = vst [vmem:[%s388] sm:$0xff] %v387
        %s390 = sld [smem:[#allocation2 + $0x200]]
        %v391 = vstv %s390
        %v392 = vmul.f32 %v391, %v194
        %s393 = sld [smem:[#allocation2 + $0x201]]
        %v394 = vstv %s393
        %v395 = vmul.f32 %v394, %v196
        %v396 = vadd.f32 %v392, %v395
        %s397 = sld [smem:[#allocation2 + $0x202]]
        %v398 = vstv %s397
        %v399 = vmul.f32 %v398, %v198
        %v400 = vadd.f32 %v396, %v399
        %s401 = sld [smem:[#allocation2 + $0x209]]
        %v402 = vstv %s401
        %v403 = vadd.f32 %v400, %v402
        %s404 = scalar_lea.vmem %s193, 96 [#allocation5]
        %405 = vst [vmem:[%s404] sm:$0xff] %v403
        %s406 = sld [smem:[#allocation2 + $0x203]]
        %v407 = vstv %s406
        %v408 = vmul.f32 %v407, %v194
        %s409 = sld [smem:[#allocation2 + $0x204]]
        %v410 = vstv %s409
        %v411 = vmul.f32 %v410, %v196
        %v412 = vadd.f32 %v408, %v411
        %s413 = sld [smem:[#allocation2 + $0x205]]
        %v414 = vstv %s413
        %v415 = vmul.f32 %v414, %v198
        %v416 = vadd.f32 %v412, %v415
        %s417 = sld [smem:[#allocation2 + $0x20a]]
        %v418 = vstv %s417
        %v419 = vadd.f32 %v416, %v418
        %s420 = scalar_lea.vmem %s193, 104 [#allocation5]
        %421 = vst [vmem:[%s420] sm:$0xff] %v419
        %s422 = sld [smem:[#allocation2 + $0x206]]
        %v423 = vstv %s422
        %v424 = vmul.f32 %v423, %v194
        %s425 = sld [smem:[#allocation2 + $0x207]]
        %v426 = vstv %s425
        %v427 = vmul.f32 %v426, %v196
        %v428 = vadd.f32 %v424, %v427
        %s429 = sld [smem:[#allocation2 + $0x208]]
        %v430 = vstv %s429
        %v431 = vmul.f32 %v430, %v198
        %v432 = vadd.f32 %v428, %v431
        %s433 = sld [smem:[#allocation2 + $0x20b]]
        %v434 = vstv %s433
        %v435 = vadd.f32 %v432, %v434
        %s436 = scalar_lea.vmem %s193, 112 [#allocation5]
        %437 = vst [vmem:[%s436] sm:$0xff] %v435
        %s438 = sld [smem:[#allocation2 + $0x280]]
        %v439 = vstv %s438
        %v440 = vmul.f32 %v439, %v194
        %s441 = sld [smem:[#allocation2 + $0x281]]
        %v442 = vstv %s441
        %v443 = vmul.f32 %v442, %v196
        %v444 = vadd.f32 %v440, %v443
        %s445 = sld [smem:[#allocation2 + $0x282]]
        %v446 = vstv %s445
        %v447 = vmul.f32 %v446, %v198
        %v448 = vadd.f32 %v444, %v447
        %s449 = sld [smem:[#allocation2 + $0x289]]
        %v450 = vstv %s449
        %v451 = vadd.f32 %v448, %v450
        %s452 = scalar_lea.vmem %s193, 120 [#allocation5]
        %453 = vst [vmem:[%s452] sm:$0xff] %v451
        %s454 = sld [smem:[#allocation2 + $0x283]]
        %v455 = vstv %s454
        %v456 = vmul.f32 %v455, %v194
        %s457 = sld [smem:[#allocation2 + $0x284]]
        %v458 = vstv %s457
        %v459 = vmul.f32 %v458, %v196
        %v460 = vadd.f32 %v456, %v459
        %s461 = sld [smem:[#allocation2 + $0x285]]
        %v462 = vstv %s461
        %v463 = vmul.f32 %v462, %v198
        %v464 = vadd.f32 %v460, %v463
        %s465 = sld [smem:[#allocation2 + $0x28a]]
        %v466 = vstv %s465
        %v467 = vadd.f32 %v464, %v466
        %s468 = scalar_lea.vmem %s193, 128 [#allocation5]
        %469 = vst [vmem:[%s468] sm:$0xff] %v467
        %s470 = sld [smem:[#allocation2 + $0x286]]
        %v471 = vstv %s470
        %v472 = vmul.f32 %v471, %v194
        %s473 = sld [smem:[#allocation2 + $0x287]]
        %v474 = vstv %s473
        %v475 = vmul.f32 %v474, %v196
        %v476 = vadd.f32 %v472, %v475
        %s477 = sld [smem:[#allocation2 + $0x288]]
        %v478 = vstv %s477
        %v479 = vmul.f32 %v478, %v198
        %v480 = vadd.f32 %v476, %v479
        %s481 = sld [smem:[#allocation2 + $0x28b]]
        %v482 = vstv %s481
        %v483 = vadd.f32 %v480, %v482
        %s484 = scalar_lea.vmem %s193, 136 [#allocation5]
        %485 = vst [vmem:[%s484] sm:$0xff] %v483
        %s486 = sld [smem:[#allocation2 + $0x300]]
        %v487 = vstv %s486
        %v488 = vmul.f32 %v487, %v194
        %s489 = sld [smem:[#allocation2 + $0x301]]
        %v490 = vstv %s489
        %v491 = vmul.f32 %v490, %v196
        %v492 = vadd.f32 %v488, %v491
        %s493 = sld [smem:[#allocation2 + $0x302]]
        %v494 = vstv %s493
        %v495 = vmul.f32 %v494, %v198
        %v496 = vadd.f32 %v492, %v495
        %s497 = sld [smem:[#allocation2 + $0x309]]
        %v498 = vstv %s497
        %v499 = vadd.f32 %v496, %v498
        %s500 = scalar_lea.vmem %s193, 144 [#allocation5]
        %501 = vst [vmem:[%s500] sm:$0xff] %v499
        %s502 = sld [smem:[#allocation2 + $0x303]]
        %v503 = vstv %s502
        %v504 = vmul.f32 %v503, %v194
        %s505 = sld [smem:[#allocation2 + $0x304]]
        %v506 = vstv %s505
        %v507 = vmul.f32 %v506, %v196
        %v508 = vadd.f32 %v504, %v507
        %s509 = sld [smem:[#allocation2 + $0x305]]
        %v510 = vstv %s509
        %v511 = vmul.f32 %v510, %v198
        %v512 = vadd.f32 %v508, %v511
        %s513 = sld [smem:[#allocation2 + $0x30a]]
        %v514 = vstv %s513
        %v515 = vadd.f32 %v512, %v514
        %s516 = scalar_lea.vmem %s193, 152 [#allocation5]
        %517 = vst [vmem:[%s516] sm:$0xff] %v515
        %s518 = sld [smem:[#allocation2 + $0x306]]
        %v519 = vstv %s518
        %v520 = vmul.f32 %v519, %v194
        %s521 = sld [smem:[#allocation2 + $0x307]]
        %v522 = vstv %s521
        %v523 = vmul.f32 %v522, %v196
        %v524 = vadd.f32 %v520, %v523
        %s525 = sld [smem:[#allocation2 + $0x308]]
        %v526 = vstv %s525
        %v527 = vmul.f32 %v526, %v198
        %v528 = vadd.f32 %v524, %v527
        %s529 = sld [smem:[#allocation2 + $0x30b]]
        %v530 = vstv %s529
        %v531 = vadd.f32 %v528, %v530
        %s532 = scalar_lea.vmem %s193, 160 [#allocation5]
        %533 = vst [vmem:[%s532] sm:$0xff] %v531
        %s534 = sld [smem:[#allocation2 + $0x380]]
        %v535 = vstv %s534
        %v536 = vmul.f32 %v535, %v194
        %s537 = sld [smem:[#allocation2 + $0x381]]
        %v538 = vstv %s537
        %v539 = vmul.f32 %v538, %v196
        %v540 = vadd.f32 %v536, %v539
        %s541 = sld [smem:[#allocation2 + $0x382]]
        %v542 = vstv %s541
        %v543 = vmul.f32 %v542, %v198
        %v544 = vadd.f32 %v540, %v543
        %s545 = sld [smem:[#allocation2 + $0x389]]
        %v546 = vstv %s545
        %v547 = vadd.f32 %v544, %v546
        %s548 = scalar_lea.vmem %s193, 168 [#allocation5]
        %549 = vst [vmem:[%s548] sm:$0xff] %v547
        %s550 = sld [smem:[#allocation2 + $0x383]]
        %v551 = vstv %s550
        %v552 = vmul.f32 %v551, %v194
        %s553 = sld [smem:[#allocation2 + $0x384]]
        %v554 = vstv %s553
        %v555 = vmul.f32 %v554, %v196
        %v556 = vadd.f32 %v552, %v555
        %s557 = sld [smem:[#allocation2 + $0x385]]
        %v558 = vstv %s557
        %v559 = vmul.f32 %v558, %v198
        %v560 = vadd.f32 %v556, %v559
        %s561 = sld [smem:[#allocation2 + $0x38a]]
        %v562 = vstv %s561
        %v563 = vadd.f32 %v560, %v562
        %s564 = scalar_lea.vmem %s193, 176 [#allocation5]
        %565 = vst [vmem:[%s564] sm:$0xff] %v563
        %s566 = sld [smem:[#allocation2 + $0x386]]
        %v567 = vstv %s566
        %v568 = vmul.f32 %v567, %v194
        %s569 = sld [smem:[#allocation2 + $0x387]]
        %v570 = vstv %s569
        %v571 = vmul.f32 %v570, %v196
        %v572 = vadd.f32 %v568, %v571
        %s573 = sld [smem:[#allocation2 + $0x388]]
        %v574 = vstv %s573
        %v575 = vmul.f32 %v574, %v198
        %v576 = vadd.f32 %v572, %v575
        %s577 = sld [smem:[#allocation2 + $0x38b]]
        %v578 = vstv %s577
        %v579 = vadd.f32 %v576, %v578
        %s580 = scalar_lea.vmem %s193, 184 [#allocation5]
        %581 = vst [vmem:[%s580] sm:$0xff] %v579
        %s582 = sand.u32 %s69, 1
        %s583 = sand.u32 %s69, 1
        %s584 = smul.addr %s583, 192
        %s585 = scalar_lea.vmem [#allocation5], %s584
        // Predicated region
        $region71: #{_transform_points_pallas.1} parent=61 // pred_check
          %p586 = pneg %p79
        $region72: #{_transform_points_pallas.1} parent=61 // pred_check_branch
          %588 = sbr.rel (%p586) target = $region74
        $region73: #{_transform_points_pallas.1} parent=61 // pred_region
          %s589 = smul.addr %s14, 8
          %s590 = scalar_lea.vmem %s2, %s589
          // Predicated region
          $region75: #{_transform_points_pallas.1} parent=73 // pred_check
            _
          $region76: #{_transform_points_pallas.1} parent=73 // pred_check_branch
            %592 = sbr.rel (0) target = $region78
          $region77: #{_transform_points_pallas.1} parent=73 // pred_region
            // Predicated region
            $region79: #{_transform_points_pallas.1} parent=77 // pred_check
              _
            $region80: #{_transform_points_pallas.1} parent=77 // pred_check_branch
              %594 = sbr.rel (0) target = $region82
            $region81: #{_transform_points_pallas.1} parent=77 // pred_region
              // Predicated region
              $region94: #{_transform_points_pallas.1} parent=81 // pred_check
                _
              $region95: #{_transform_points_pallas.1} parent=81 // pred_check_branch
                %655 = sbr.rel (0) target = $region97
              $region96: #{_transform_points_pallas.1} parent=81 // pred_region
                loop: start=0, step=1, limit=1
                $region98: #{_transform_points_pallas.1} parent=96 // loop_pre_header
                  _
                $region99: #{_transform_points_pallas.1} parent=96 // loop_header
                  %s657 = sphi 0, %s661
                  %p658 = scmp.ge.s32.totalorder %s657, 1
                  %s662 = sphi %s585, %s585
                  %s663 = sphi %s590, %s590
                $region100: #{_transform_points_pallas.1} parent=96 // loop_header_branch
                  %660 = sbr.rel (%p658) target = $region104
                $region101: #{_transform_points_pallas.1} parent=96 // loop_body
                  %v664 = vld [vmem:[%s662] sm:$0xff]
                  %665 = vst [vmem:[%s663] sm:$0xff] %v664
                  %v666 = vld [vmem:[%s662 + $0x8] sm:$0xff]
                  %667 = vst [vmem:[%s663 + $0x20] sm:$0xff] %v666
                  %v668 = vld [vmem:[%s662 + $0x10] sm:$0xff]
                  %669 = vst [vmem:[%s663 + $0x40] sm:$0xff] %v668
                  %v670 = vld [vmem:[%s662 + $0x18] sm:$0xff]
                  %671 = vst [vmem:[%s663 + $0x60] sm:$0xff] %v670
                  %v672 = vld [vmem:[%s662 + $0x20] sm:$0xff]
                  %673 = vst [vmem:[%s663 + $0x80] sm:$0xff] %v672
                  %v674 = vld [vmem:[%s662 + $0x28] sm:$0xff]
                  %675 = vst [vmem:[%s663 + $0xa0] sm:$0xff] %v674
                  %v676 = vld [vmem:[%s662 + $0x30] sm:$0xff]
                  %677 = vst [vmem:[%s663 + $0xc0] sm:$0xff] %v676
                  %v678 = vld [vmem:[%s662 + $0x38] sm:$0xff]
                  %679 = vst [vmem:[%s663 + $0xe0] sm:$0xff] %v678
                  %v680 = vld [vmem:[%s662 + $0x40] sm:$0xff]
                  %681 = vst [vmem:[%s663 + $0x100] sm:$0xff] %v680
                  %v682 = vld [vmem:[%s662 + $0x48] sm:$0xff]
                  %683 = vst [vmem:[%s663 + $0x120] sm:$0xff] %v682
                  %v684 = vld [vmem:[%s662 + $0x50] sm:$0xff]
                  %685 = vst [vmem:[%s663 + $0x140] sm:$0xff] %v684
                  %v686 = vld [vmem:[%s662 + $0x58] sm:$0xff]
                  %687 = vst [vmem:[%s663 + $0x160] sm:$0xff] %v686
                  %v688 = vld [vmem:[%s662 + $0x60] sm:$0xff]
                  %689 = vst [vmem:[%s663 + $0x180] sm:$0xff] %v688
                  %v690 = vld [vmem:[%s662 + $0x68] sm:$0xff]
                  %691 = vst [vmem:[%s663 + $0x1a0] sm:$0xff] %v690
                  %v692 = vld [vmem:[%s662 + $0x70] sm:$0xff]
                  %693 = vst [vmem:[%s663 + $0x1c0] sm:$0xff] %v692
                  %v694 = vld [vmem:[%s662 + $0x78] sm:$0xff]
                  %695 = vst [vmem:[%s663 + $0x1e0] sm:$0xff] %v694
                  %v696 = vld [vmem:[%s662 + $0x80] sm:$0xff]
                  %697 = vst [vmem:[%s663 + $0x200] sm:$0xff] %v696
                  %v698 = vld [vmem:[%s662 + $0x88] sm:$0xff]
                  %699 = vst [vmem:[%s663 + $0x220] sm:$0xff] %v698
                  %v700 = vld [vmem:[%s662 + $0x90] sm:$0xff]
                  %701 = vst [vmem:[%s663 + $0x240] sm:$0xff] %v700
                  %v702 = vld [vmem:[%s662 + $0x98] sm:$0xff]
                  %703 = vst [vmem:[%s663 + $0x260] sm:$0xff] %v702
                  %v704 = vld [vmem:[%s662 + $0xa0] sm:$0xff]
                  %705 = vst [vmem:[%s663 + $0x280] sm:$0xff] %v704
                  %v706 = vld [vmem:[%s662 + $0xa8] sm:$0xff]
                  %707 = vst [vmem:[%s663 + $0x2a0] sm:$0xff] %v706
                  %v708 = vld [vmem:[%s662 + $0xb0] sm:$0xff]
                  %709 = vst [vmem:[%s663 + $0x2c0] sm:$0xff] %v708
                  %v710 = vld [vmem:[%s662 + $0xb8] sm:$0xff]
                  %711 = vst [vmem:[%s663 + $0x2e0] sm:$0xff] %v710
                $region102: #{_transform_points_pallas.1} parent=96 // loop_footer
                  %s661 = sadd.s32 1, %s657
                $region103: #{_transform_points_pallas.1} parent=96 // loop_footer_branch
                  %656 = sbr.rel target = $region99
                $region104: #{_transform_points_pallas.1} parent=96 // loop_exit
                  _
              $region97: #{_transform_points_pallas.1} parent=81 // pred_fallthru
                _
              // Predicated region
              $region105: #{_transform_points_pallas.1} parent=81 // pred_check
                _
              $region106: #{_transform_points_pallas.1} parent=81 // pred_check_branch
                %713 = sbr.rel target = $region108
              $region107: #{_transform_points_pallas.1} parent=81 // pred_region
                _
              $region108: #{_transform_points_pallas.1} parent=81 // pred_fallthru
                _
            $region82: #{_transform_points_pallas.1} parent=77 // pred_fallthru
              _
            // Predicated region
            $region83: #{_transform_points_pallas.1} parent=77 // pred_check
              _
            $region84: #{_transform_points_pallas.1} parent=77 // pred_check_branch
              %596 = sbr.rel target = $region86
            $region85: #{_transform_points_pallas.1} parent=77 // pred_region
              loop: start=0, step=1, limit=1
              $region87: #{_transform_points_pallas.1} parent=85 // loop_pre_header
                _
              $region88: #{_transform_points_pallas.1} parent=85 // loop_header
                %s599 = sphi 0, %s603
                %p600 = scmp.ge.s32.totalorder %s599, 1
                %s604 = sphi %s585, %s585
                %s605 = sphi %s590, %s590
              $region89: #{_transform_points_pallas.1} parent=85 // loop_header_branch
                %602 = sbr.rel (%p600) target = $region93
              $region90: #{_transform_points_pallas.1} parent=85 // loop_body
                %v606 = vld [vmem:[%s604] sm:$0xff]
                %607 = vst [vmem:[%s605] sm:$0xff] %v606
                %v608 = vld [vmem:[%s604 + $0x8] sm:$0xff]
                %609 = vst [vmem:[%s605 + $0x20] sm:$0xff] %v608
                %v610 = vld [vmem:[%s604 + $0x10] sm:$0xff]
                %611 = vst [vmem:[%s605 + $0x40] sm:$0xff] %v610
                %v612 = vld [vmem:[%s604 + $0x18] sm:$0xff]
                %613 = vst [vmem:[%s605 + $0x60] sm:$0xff] %v612
                %v614 = vld [vmem:[%s604 + $0x20] sm:$0xff]
                %615 = vst [vmem:[%s605 + $0x80] sm:$0xff] %v614
                %v616 = vld [vmem:[%s604 + $0x28] sm:$0xff]
                %617 = vst [vmem:[%s605 + $0xa0] sm:$0xff] %v616
                %v618 = vld [vmem:[%s604 + $0x30] sm:$0xff]
                %619 = vst [vmem:[%s605 + $0xc0] sm:$0xff] %v618
                %v620 = vld [vmem:[%s604 + $0x38] sm:$0xff]
                %621 = vst [vmem:[%s605 + $0xe0] sm:$0xff] %v620
                %v622 = vld [vmem:[%s604 + $0x40] sm:$0xff]
                %623 = vst [vmem:[%s605 + $0x100] sm:$0xff] %v622
                %v624 = vld [vmem:[%s604 + $0x48] sm:$0xff]
                %625 = vst [vmem:[%s605 + $0x120] sm:$0xff] %v624
                %v626 = vld [vmem:[%s604 + $0x50] sm:$0xff]
                %627 = vst [vmem:[%s605 + $0x140] sm:$0xff] %v626
                %v628 = vld [vmem:[%s604 + $0x58] sm:$0xff]
                %629 = vst [vmem:[%s605 + $0x160] sm:$0xff] %v628
                %v630 = vld [vmem:[%s604 + $0x60] sm:$0xff]
                %631 = vst [vmem:[%s605 + $0x180] sm:$0xff] %v630
                %v632 = vld [vmem:[%s604 + $0x68] sm:$0xff]
                %633 = vst [vmem:[%s605 + $0x1a0] sm:$0xff] %v632
                %v634 = vld [vmem:[%s604 + $0x70] sm:$0xff]
                %635 = vst [vmem:[%s605 + $0x1c0] sm:$0xff] %v634
                %v636 = vld [vmem:[%s604 + $0x78] sm:$0xff]
                %637 = vst [vmem:[%s605 + $0x1e0] sm:$0xff] %v636
                %v638 = vld [vmem:[%s604 + $0x80] sm:$0xff]
                %639 = vst [vmem:[%s605 + $0x200] sm:$0xff] %v638
                %v640 = vld [vmem:[%s604 + $0x88] sm:$0xff]
                %641 = vst [vmem:[%s605 + $0x220] sm:$0xff] %v640
                %v642 = vld [vmem:[%s604 + $0x90] sm:$0xff]
                %643 = vst [vmem:[%s605 + $0x240] sm:$0xff] %v642
                %v644 = vld [vmem:[%s604 + $0x98] sm:$0xff]
                %645 = vst [vmem:[%s605 + $0x260] sm:$0xff] %v644
                %v646 = vld [vmem:[%s604 + $0xa0] sm:$0xff]
                %647 = vst [vmem:[%s605 + $0x280] sm:$0xff] %v646
                %v648 = vld [vmem:[%s604 + $0xa8] sm:$0xff]
                %649 = vst [vmem:[%s605 + $0x2a0] sm:$0xff] %v648
                %v650 = vld [vmem:[%s604 + $0xb0] sm:$0xff]
                %651 = vst [vmem:[%s605 + $0x2c0] sm:$0xff] %v650
                %v652 = vld [vmem:[%s604 + $0xb8] sm:$0xff]
                %653 = vst [vmem:[%s605 + $0x2e0] sm:$0xff] %v652
              $region91: #{_transform_points_pallas.1} parent=85 // loop_footer
                %s603 = sadd.s32 1, %s599
              $region92: #{_transform_points_pallas.1} parent=85 // loop_footer_branch
                %598 = sbr.rel target = $region88
              $region93: #{_transform_points_pallas.1} parent=85 // loop_exit
                _
            $region86: #{_transform_points_pallas.1} parent=77 // pred_fallthru
              _
          $region78: #{_transform_points_pallas.1} parent=73 // pred_fallthru
            _
          %714 = vnop
        $region74: #{_transform_points_pallas.1} parent=61 // pred_fallthru
          _
      $region62: #{_transform_points_pallas.1} parent=5 // pred_fallthru
        _
      %p715 = scmp.le.s32.totalorder 2, %s9
      // Predicated region
      $region109: #{_transform_points_pallas.1} parent=5 // pred_check
        %p716 = pneg %p715
      $region110: #{_transform_points_pallas.1} parent=5 // pred_check_branch
        %718 = sbr.rel (%p716) target = $region112
      $region111: #{_transform_points_pallas.1} parent=5 // pred_region
        %s719 = ssub.s32 %s9, 2
        // Predicated region
        $region113: #{_transform_points_pallas.1} parent=111 // pred_check
          %p720 = pneg %p85
        $region114: #{_transform_points_pallas.1} parent=111 // pred_check_branch
          %722 = sbr.rel (%p720) target = $region116
        $region115: #{_transform_points_pallas.1} parent=111 // pred_region
          %s723 = sand.u32 %s70, 1
          %s724 = sand.u32 %s70, 1
          %s725 = smul.addr %s724, 192
          %s726 = scalar_lea.vmem [#allocation5], %s725
        $region116: #{_transform_points_pallas.1} parent=111 // pred_fallthru
          _
      $region112: #{_transform_points_pallas.1} parent=5 // pred_fallthru
        _
    $region6: #{_transform_points_pallas.1} parent=1 // loop_footer
      %s13 = sadd.s32 1, %s9
    $region7: #{_transform_points_pallas.1} parent=1 // loop_footer_branch
      %8 = sbr.rel target = $region3
    $region8: #{_transform_points_pallas.1} parent=1 // loop_exit
      _
    %727 = vsyncpa [#allocation3], 1
    %s728 = scalar_lea.sflag [#allocation3], 1
    %729 = vsyncpa %s728, 1

</llo_original>
